<compile_context>
chip_gen: v7x
topology: tpu7x:2x2x1
jax: 0.10.0
libtpu: 0.0.40
codegen_flags: <defaults>
</compile_context>

<pallas_src>
import math
import numpy as np
import jax
import jax.numpy as jnp
from jax import lax
from jax.experimental import pallas as pl
from jax.experimental.pallas import tpu as pltpu

# ---- small hyperparameters consistent with the module structure ----
T = 8            # input_timesteps / sequence length
B = 2            # batch
D = 40           # d_model (divisible by nhead=10)
NHEAD = 10
HEAD_DIM = D // NHEAD
FF = 64          # dim_feedforward
BT = B * T       # flattened tokens (t-major: row = t*B + b)
HB = NHEAD * BT  # head-replicated token rows
EPS = 1e-5       # LayerNorm eps (PyTorch default)
NEG_INF = -1e30  # stands in for -inf in the causal mask
LEAKY_SLOPE = 0.01

# ---- packed-slab row offsets (all sublane-aligned: multiples of 8) ----
# matrix slab "mats": (M_ROWS, 128)
M_WQKV = 0                 # rows [  0, 40)  cols [0,120)  (q part pre-scaled)
M_WO   = D                 # rows [ 40, 80)  cols [0, 40)
M_W1   = 2 * D             # rows [ 80,120)  cols [0, 64)
M_W2   = 3 * D             # rows [120,184)  cols [0, 40)
M_SEL  = 3 * D + FF        # rows [184,344)  cols [0, 40)  head selector
M_MSK  = M_SEL + HB        # rows [344,504)  cols [0, 16)  replicated causal/batch mask
M_ROWS = M_MSK + HB        # 504

# vector slab "vecs": (V_ROWS, 128)
V_WT2V = 0                 # rows [ 0,16)  Time2Vec weight, expanded t-major
V_PE   = BT                # rows [16,32)  positional encoding, expanded t-major
V_BT2V = 2 * BT            # 32
V_BQKV = V_BT2V + 1        # 33  (q part pre-scaled)
V_BO   = V_BT2V + 2        # 34
V_G1   = V_BT2V + 3        # 35
V_BE1  = V_BT2V + 4        # 36
V_B1   = V_BT2V + 5        # 37
V_B2   = V_BT2V + 6        # 38
V_G2   = V_BT2V + 7        # 39
V_BE2  = V_BT2V + 8        # 40
V_WD   = V_BT2V + 9        # 41  decoder weight as a (1, D) row
V_BD   = V_BT2V + 10       # 42
V_ROWS = 48


def transts_kernel(tau_ref, mats_ref, vecs_ref, out_ref):
    """Single invocation: whole (B*T, D) batch slab, 2 packed parameter slabs."""
    tau = tau_ref[...]                                        # (BT, 1)

    # ---- Time2Vec (elementwise; sin never applied in the reference impl) ----
    w_t2v = vecs_ref[V_WT2V:V_WT2V + BT, 0:D]                 # (BT, D)
    b_t2v = vecs_ref[V_BT2V:V_BT2V + 1, 0:D]                  # (1, D)
    x = tau * w_t2v + b_t2v                                   # (BT, D)

    # ---- src += PositionalEncoding(src)  ==>  2*src + pe ----
    pe = vecs_ref[V_PE:V_PE + BT, 0:D]
    x = 2.0 * x + pe

    # ---- fused QKV projection (scale already folded into Wq / bq) ----
    wqkv = mats_ref[M_WQKV:M_WQKV + D, 0:3 * D]               # (D, 3D)
    bqkv = vecs_ref[V_BQKV:V_BQKV + 1, 0:3 * D]               # (1, 3D)
    qkv = jnp.dot(x, wqkv, preferred_element_type=jnp.float32) + bqkv
    q = qkv[:, 0:D]                                           # (BT, D), pre-scaled
    k = qkv[:, D:2 * D]
    v = qkv[:, 2 * D:3 * D]

    # ---- all-head attention without per-head slices/transposes ----
    sel = mats_ref[M_SEL:M_SEL + HB, 0:D]                     # (HB, D) head selector
    maskr = mats_ref[M_MSK:M_MSK + HB, 0:BT]                  # (HB, BT) causal+batch mask
    q_rep = jnp.tile(q, (NHEAD, 1)) * sel                     # (HB, D)
    # scores[h*BT+i, j] = q_h[i] . k_h[j]   (contract dim 1 of both; no explicit k.T)
    s = lax.dot_general(q_rep, k, (((1,), (1,)), ((), ())),
                        preferred_element_type=jnp.float32) + maskr     # (HB, BT)
    s = s - jnp.max(s, axis=-1, keepdims=True)
    p = jnp.exp(s)
    p = p * pl.reciprocal(jnp.sum(p, axis=-1, keepdims=True), approx=True)
    ctx_full = jnp.dot(p, v, preferred_element_type=jnp.float32)        # (HB, D)
    # keep only each head's own column block, then sum the NHEAD replicas
    ctx = jnp.sum((ctx_full * sel).reshape(NHEAD, BT, D), axis=0)       # (BT, D)

    wo = mats_ref[M_WO:M_WO + D, 0:D]
    bo = vecs_ref[V_BO:V_BO + 1, 0:D]
    attn_out = jnp.dot(ctx, wo, preferred_element_type=jnp.float32) + bo

    # ---- residual + LayerNorm1 (post-norm) ----
    g1 = vecs_ref[V_G1:V_G1 + 1, 0:D]
    be1 = vecs_ref[V_BE1:V_BE1 + 1, 0:D]
    y = x + attn_out
    mu = jnp.mean(y, axis=-1, keepdims=True)
    var = jnp.mean(jnp.square(y - mu), axis=-1, keepdims=True)
    y = (y - mu) * lax.rsqrt(var + EPS) * g1 + be1

    # ---- feed-forward (ReLU) ----
    w1 = mats_ref[M_W1:M_W1 + D, 0:FF]
    b1 = vecs_ref[V_B1:V_B1 + 1, 0:FF]
    w2 = mats_ref[M_W2:M_W2 + FF, 0:D]
    b2 = vecs_ref[V_B2:V_B2 + 1, 0:D]
    h1 = jnp.maximum(jnp.dot(y, w1, preferred_element_type=jnp.float32) + b1, 0.0)
    ff = jnp.dot(h1, w2, preferred_element_type=jnp.float32) + b2

    # ---- residual + LayerNorm2 ----
    g2 = vecs_ref[V_G2:V_G2 + 1, 0:D]
    be2 = vecs_ref[V_BE2:V_BE2 + 1, 0:D]
    z = y + ff
    mu2 = jnp.mean(z, axis=-1, keepdims=True)
    var2 = jnp.mean(jnp.square(z - mu2), axis=-1, keepdims=True)
    z = (z - mu2) * lax.rsqrt(var2 + EPS) * g2 + be2

    # ---- decoder Linear(D, 1) as VPU multiply + cross-lane reduce, + leaky_relu ----
    wd = vecs_ref[V_WD:V_WD + 1, 0:D]                         # (1, D)
    bd = vecs_ref[V_BD:V_BD + 1, 0:1]                         # (1, 1)
    o = jnp.sum(z * wd, axis=-1, keepdims=True) + bd          # (BT, 1)
    out_ref[...] = jnp.where(o >= 0.0, o, LEAKY_SLOPE * o)


def transts_forward(src_tb1, packed):
    """src_tb1: (T, B, 1) sequence-major (PyTorch convention). Returns (T, B, 1)."""
    tau = src_tb1.reshape(T * B, 1).astype(jnp.float32)       # t-major flatten, no transpose
    out = pl.pallas_call(
        transts_kernel,
        out_shape=jax.ShapeDtypeStruct((BT, 1), jnp.float32),
        in_specs=[
            pl.BlockSpec(memory_space=pltpu.MemorySpace.VMEM),   # tau   (16, 1)
            pl.BlockSpec(memory_space=pltpu.MemorySpace.VMEM),   # mats  (504, 128)
            pl.BlockSpec(memory_space=pltpu.MemorySpace.VMEM),   # vecs  (48, 128)
        ],
        out_specs=pl.BlockSpec(memory_space=pltpu.MemorySpace.VMEM),
    )(tau, packed["mats"], packed["vecs"])
    return out.reshape(T, B, 1)                               # t-major -> (T, B, 1)


def make_params(key):
    ks = jax.random.split(key, 16)

    def kaiming(k, shape):
        bound = math.sqrt(6.0 / shape[0])
        return jax.random.uniform(k, shape, jnp.float32, -bound, bound)

    def small(k, shape):
        return jax.random.uniform(k, shape, jnp.float32, -0.1, 0.1)

    # --- Time2Vec: omega (T,1,D), psi (D,) folded into elementwise W, b ---
    omega = kaiming(ks[0], (T, D)).reshape(T, 1, D)
    psi = small(ks[1], (D,))
    w_t2v = jnp.concatenate([omega[:, 0, 0:1], omega[:, 0, 1:] + psi[None, 1:]], axis=-1)
    b_t2v = jnp.concatenate([psi[0:1], jnp.zeros((D - 1,), jnp.float32)])[None, :]

    # --- PositionalEncoding buffer (exact PyTorch formula, first T rows) ---
    pos = np.arange(T, dtype=np.float32)[:, None]
    div = np.exp(np.arange(0, D, 2, dtype=np.float32) * (-np.log(10000.0) / D))
    pe_np = np.zeros((T, D), np.float32)
    pe_np[:, 0::2] = np.sin(pos * div)
    pe_np[:, 1::2] = np.cos(pos * div)

    # --- causal mask (0 where j<=i, -inf otherwise; -1e30 stands in for -inf) ---
    mask_np = np.where(np.tril(np.ones((T, T), np.float32)) == 1.0, 0.0, NEG_INF)

    return dict(
        w_t2v=w_t2v, b_t2v=b_t2v,
        pe=jnp.asarray(pe_np), mask=jnp.asarray(mask_np.astype(np.float32)),
        wq=kaiming(ks[2], (D, D)), bq=small(ks[3], (1, D)),
        wk=kaiming(ks[4], (D, D)), bk=small(ks[5], (1, D)),
        wv=kaiming(ks[6], (D, D)), bv=small(ks[7], (1, D)),
        wo=kaiming(ks[8], (D, D)), bo=small(ks[9], (1, D)),
        g1=jnp.ones((1, D), jnp.float32), be1=jnp.zeros((1, D), jnp.float32),
        w1=kaiming(ks[10], (D, FF)), b1=small(ks[11], (1, FF)),
        w2=kaiming(ks[12], (FF, D)), b2=small(ks[13], (1, D)),
        g2=jnp.ones((1, D), jnp.float32), be2=jnp.zeros((1, D), jnp.float32),
        wd=kaiming(ks[14], (D, 1)), bd=small(ks[15], (1, 1)),
    )


def pack_params(p):
    """Pack the 23 tiny parameters into two (rows, 128) slabs (2 DMAs total)."""
    scale = 1.0 / math.sqrt(HEAD_DIM)

    def pad_lanes(a, width=128):
        a = jnp.asarray(a, jnp.float32)
        return jnp.pad(a, ((0, 0), (0, width - a.shape[1])))

    # fused QKV with the attention scale folded into the Q projection
    wqkv = jnp.concatenate([p["wq"] * scale, p["wk"], p["wv"]], axis=1)   # (D, 3D)
    bqkv = jnp.concatenate([p["bq"] * scale, p["bk"], p["bv"]], axis=1)   # (1, 3D)

    # head selector: sel[h*BT + r, c] = 1.0 iff column c belongs to head h
    hsel = (np.arange(D)[None, :] // HEAD_DIM ==
            np.arange(HB)[:, None] // BT).astype(np.float32)              # (HB, D)

    # t-major flat causal/batch mask, replicated per head
    r = np.arange(BT)
    t_idx, b_idx = r // B, r % B
    base = np.where((b_idx[:, None] == b_idx[None, :]) &
                    (t_idx[None, :] <= t_idx[:, None]), 0.0, NEG_INF).astype(np.float32)
    mask_rep = np.tile(base, (NHEAD, 1))                                  # (HB, BT)

    mats = jnp.concatenate([
        pad_lanes(wqkv),        # rows [  0, 40)
        pad_lanes(p["wo"]),     # rows [ 40, 80)
        pad_lanes(p["w1"]),     # rows [ 80,120)
        pad_lanes(p["w2"]),     # rows [120,184)
        pad_lanes(hsel),        # rows [184,344)
        pad_lanes(mask_rep),    # rows [344,504)
    ], axis=0)
    assert mats.shape == (M_ROWS, 128), mats.shape

    # t-major expanded Time2Vec weight / positional encoding (row r = t*B + b -> t = r//B)
    w_t2v_flat = jnp.repeat(p["w_t2v"], B, axis=0)                        # (BT, D)
    pe_flat = jnp.repeat(p["pe"], B, axis=0)                              # (BT, D)

    vecs = jnp.concatenate([
        pad_lanes(w_t2v_flat),          # [ 0,16)
        pad_lanes(pe_flat),             # [16,32)
        pad_lanes(p["b_t2v"]),          # 32
        pad_lanes(bqkv),                # 33
        pad_lanes(p["bo"]),             # 34
        pad_lanes(p["g1"]),             # 35
        pad_lanes(p["be1"]),            # 36
        pad_lanes(p["b1"]),             # 37
        pad_lanes(p["b2"]),             # 38
        pad_lanes(p["g2"]),             # 39
        pad_lanes(p["be2"]),            # 40
        pad_lanes(p["wd"].T),           # 41  (D,1) -> (1,D)
        pad_lanes(p["bd"]),             # 42
    ], axis=0)
    vecs = jnp.pad(vecs, ((0, V_ROWS - vecs.shape[0]), (0, 0)))
    assert vecs.shape == (V_ROWS, 128), vecs.shape

    return dict(mats=mats, vecs=vecs)


def _layernorm(x, g, b):
    mu = jnp.mean(x, axis=-1, keepdims=True)
    var = jnp.mean(jnp.square(x - mu), axis=-1, keepdims=True)
    return (x - mu) * lax.rsqrt(var + EPS) * g + b


def transts_ref(src, p):
    """Pure-JAX reference, same math, used only for a correctness check."""
    hp = jax.lax.Precision.HIGHEST
    tau = jnp.transpose(src, (1, 0, 2))                     # (B, T, 1)
    x = tau * p["w_t2v"][None] + p["b_t2v"][None]
    x = 2.0 * x + p["pe"][None]
    q = jnp.einsum("btd,de->bte", x, p["wq"], precision=hp) + p["bq"]
    k = jnp.einsum("btd,de->bte", x, p["wk"], precision=hp) + p["bk"]
    v = jnp.einsum("btd,de->bte", x, p["wv"], precision=hp) + p["bv"]
    q = q.reshape(B, T, NHEAD, HEAD_DIM)
    k = k.reshape(B, T, NHEAD, HEAD_DIM)
    v = v.reshape(B, T, NHEAD, HEAD_DIM)
    s = jnp.einsum("bihd,bjhd->bhij", q, k, precision=hp) / math.sqrt(HEAD_DIM) + p["mask"]
    a = jax.nn.softmax(s, axis=-1)
    ctx = jnp.einsum("bhij,bjhd->bihd", a, v, precision=hp).reshape(B, T, D)
    attn_out = jnp.einsum("btd,de->bte", ctx, p["wo"], precision=hp) + p["bo"]
    y = _layernorm(x + attn_out, p["g1"], p["be1"])
    h1 = jax.nn.relu(jnp.einsum("btd,df->btf", y, p["w1"], precision=hp) + p["b1"])
    ff = jnp.einsum("btf,fd->btd", h1, p["w2"], precision=hp) + p["b2"]
    z = _layernorm(y + ff, p["g2"], p["be2"])
    o = jnp.einsum("btd,do->bto", z, p["wd"], precision=hp) + p["bd"]
    o = jnp.where(o >= 0.0, o, LEAKY_SLOPE * o)
    return jnp.transpose(o, (1, 0, 2))


if __name__ == "__main__":
    key = jax.random.PRNGKey(0)
    k_src, k_par = jax.random.split(key)
    # PyTorch convention: src is (seq_len, batch, 1)
    src = jax.random.normal(k_src, (T, B, 1), jnp.float32)
    params = make_params(k_par)
    packed = pack_params(params)

    out = transts_forward(src, packed)
    out = jax.block_until_ready(out)

    assert out.shape == (T, B, 1), out.shape
    ref = transts_ref(src, params)
    err = float(jnp.max(jnp.abs(out - ref)))
    assert np.isfinite(err) and err < 1e-2, f"mismatch vs pure-JAX reference: {err}"
    print("KERNEL_OK")
</pallas_src>

<mosaic_0001>
module attributes {stable_mosaic.version = 11 : i64} {
  func.func @transts_kernel(%arg0: memref<16x1xf32, #tpu.memory_space<vmem>>, %arg1: memref<504x128xf32, #tpu.memory_space<vmem>>, %arg2: memref<48x128xf32, #tpu.memory_space<vmem>>, %arg3: memref<16x1xf32, #tpu.memory_space<vmem>>) attributes {dimension_semantics = [], scalar_prefetch = 0 : i64, scratch_operands = 0 : i64, tpu.core_type = #tpu.core_type<tc>} {
    %c0 = arith.constant 0 : index
    %c0_0 = arith.constant 0 : index
    %0 = vector.load %arg0[%c0, %c0_0] : memref<16x1xf32, #tpu.memory_space<vmem>>, vector<16x1xf32>
    %c0_1 = arith.constant 0 : index
    %c0_2 = arith.constant 0 : index
    %1 = vector.load %arg2[%c0_1, %c0_2] : memref<48x128xf32, #tpu.memory_space<vmem>>, vector<16x40xf32>
    %c32 = arith.constant 32 : index
    %c0_3 = arith.constant 0 : index
    %2 = vector.load %arg2[%c32, %c0_3] : memref<48x128xf32, #tpu.memory_space<vmem>>, vector<1x40xf32>
    %3 = vector.broadcast %0 : vector<16x1xf32> to vector<16x40xf32>
    %4 = arith.mulf %3, %1 : vector<16x40xf32>
    %5 = vector.broadcast %2 : vector<1x40xf32> to vector<16x40xf32>
    %6 = arith.addf %4, %5 : vector<16x40xf32>
    %c16 = arith.constant 16 : index
    %c0_4 = arith.constant 0 : index
    %7 = vector.load %arg2[%c16, %c0_4] : memref<48x128xf32, #tpu.memory_space<vmem>>, vector<16x40xf32>
    %cst = arith.constant 2.000000e+00 : f32
    %8 = vector.broadcast %cst : f32 to vector<16x40xf32>
    %9 = arith.mulf %8, %6 : vector<16x40xf32>
    %10 = arith.addf %9, %7 : vector<16x40xf32>
    %c0_5 = arith.constant 0 : index
    %c0_6 = arith.constant 0 : index
    %11 = vector.load %arg1[%c0_5, %c0_6] : memref<504x128xf32, #tpu.memory_space<vmem>>, vector<40x120xf32>
    %c33 = arith.constant 33 : index
    %c0_7 = arith.constant 0 : index
    %12 = vector.load %arg2[%c33, %c0_7] : memref<48x128xf32, #tpu.memory_space<vmem>>, vector<1x120xf32>
    %cst_8 = arith.constant dense<0.000000e+00> : vector<16x120xf32>
    %13 = tpu.matmul %10, %11, %cst_8 {dimension_numbers = #tpu.dot_dimension_numbers<[1], [0], [0], [1], [0, 0, 1, 1], [], []>} : vector<16x40xf32>, vector<40x120xf32>, vector<16x120xf32> -> vector<16x120xf32>
    %14 = vector.broadcast %12 : vector<1x120xf32> to vector<16x120xf32>
    %15 = arith.addf %13, %14 : vector<16x120xf32>
    %16 = vector.extract_strided_slice %15 {offsets = [0, 0], sizes = [16, 40], strides = [1, 1]} : vector<16x120xf32> to vector<16x40xf32>
    %17 = vector.extract_strided_slice %15 {offsets = [0, 40], sizes = [16, 40], strides = [1, 1]} : vector<16x120xf32> to vector<16x40xf32>
    %18 = vector.extract_strided_slice %15 {offsets = [0, 80], sizes = [16, 40], strides = [1, 1]} : vector<16x120xf32> to vector<16x40xf32>
    %c184 = arith.constant 184 : index
    %c0_9 = arith.constant 0 : index
    %19 = vector.load %arg1[%c184, %c0_9] : memref<504x128xf32, #tpu.memory_space<vmem>>, vector<160x40xf32>
    %c344 = arith.constant 344 : index
    %c0_10 = arith.constant 0 : index
    %20 = vector.load %arg1[%c344, %c0_10] : memref<504x128xf32, #tpu.memory_space<vmem>>, vector<160x16xf32>
    %21 = tpu.concatenate %16, %16, %16, %16, %16, %16, %16, %16, %16, %16 in 0 : vector<16x40xf32>, vector<16x40xf32>, vector<16x40xf32>, vector<16x40xf32>, vector<16x40xf32>, vector<16x40xf32>, vector<16x40xf32>, vector<16x40xf32>, vector<16x40xf32>, vector<16x40xf32> -> vector<160x40xf32>
    %22 = arith.mulf %21, %19 : vector<160x40xf32>
    %cst_11 = arith.constant dense<0.000000e+00> : vector<160x16xf32>
    %23 = tpu.matmul %22, %17, %cst_11 {dimension_numbers = #tpu.dot_dimension_numbers<[1], [1], [0], [0], [0, 0, 1, 0], [], []>} : vector<160x40xf32>, vector<16x40xf32>, vector<160x16xf32> -> vector<160x16xf32>
    %24 = arith.addf %23, %20 : vector<160x16xf32>
    %cst_12 = arith.constant dense<0xFF800000> : vector<160xf32>
    %25 = vector.multi_reduction <maximumf>, %24, %cst_12 [1] : vector<160x16xf32> to vector<160xf32>
    %26 = vector.shape_cast %25 : vector<160xf32> to vector<160x1xf32>
    %27 = vector.broadcast %26 : vector<160x1xf32> to vector<160x16xf32>
    %28 = arith.subf %24, %27 : vector<160x16xf32>
    %29 = math.exp %28 : vector<160x16xf32>
    %cst_13 = arith.constant dense<0.000000e+00> : vector<160xf32>
    %30 = vector.multi_reduction <add>, %29, %cst_13 [1] : vector<160x16xf32> to vector<160xf32>
    %31 = vector.shape_cast %30 : vector<160xf32> to vector<160x1xf32>
    %32 = tpu.reciprocal %31 {approx = true} : vector<160x1xf32> -> vector<160x1xf32>
    %33 = vector.broadcast %32 : vector<160x1xf32> to vector<160x16xf32>
    %34 = arith.mulf %29, %33 : vector<160x16xf32>
    %cst_14 = arith.constant dense<0.000000e+00> : vector<160x40xf32>
    %35 = tpu.matmul %34, %18, %cst_14 {dimension_numbers = #tpu.dot_dimension_numbers<[1], [0], [0], [1], [0, 0, 1, 1], [], []>} : vector<160x16xf32>, vector<16x40xf32>, vector<160x40xf32> -> vector<160x40xf32>
    %36 = arith.mulf %35, %19 : vector<160x40xf32>
    %37 = vector.shape_cast %36 : vector<160x40xf32> to vector<10x16x40xf32>
    %cst_15 = arith.constant dense<0.000000e+00> : vector<16x40xf32>
    %38 = vector.multi_reduction <add>, %37, %cst_15 [0] : vector<10x16x40xf32> to vector<16x40xf32>
    %c40 = arith.constant 40 : index
    %c0_16 = arith.constant 0 : index
    %39 = vector.load %arg1[%c40, %c0_16] : memref<504x128xf32, #tpu.memory_space<vmem>>, vector<40x40xf32>
    %c34 = arith.constant 34 : index
    %c0_17 = arith.constant 0 : index
    %40 = vector.load %arg2[%c34, %c0_17] : memref<48x128xf32, #tpu.memory_space<vmem>>, vector<1x40xf32>
    %cst_18 = arith.constant dense<0.000000e+00> : vector<16x40xf32>
    %41 = tpu.matmul %38, %39, %cst_18 {dimension_numbers = #tpu.dot_dimension_numbers<[1], [0], [0], [1], [0, 0, 1, 1], [], []>} : vector<16x40xf32>, vector<40x40xf32>, vector<16x40xf32> -> vector<16x40xf32>
    %42 = vector.broadcast %40 : vector<1x40xf32> to vector<16x40xf32>
    %43 = arith.addf %41, %42 : vector<16x40xf32>
    %c35 = arith.constant 35 : index
    %c0_19 = arith.constant 0 : index
    %44 = vector.load %arg2[%c35, %c0_19] : memref<48x128xf32, #tpu.memory_space<vmem>>, vector<1x40xf32>
    %c36 = arith.constant 36 : index
    %c0_20 = arith.constant 0 : index
    %45 = vector.load %arg2[%c36, %c0_20] : memref<48x128xf32, #tpu.memory_space<vmem>>, vector<1x40xf32>
    %46 = arith.addf %10, %43 : vector<16x40xf32>
    %cst_21 = arith.constant dense<0.000000e+00> : vector<16xf32>
    %47 = vector.multi_reduction <add>, %46, %cst_21 [1] : vector<16x40xf32> to vector<16xf32>
    %48 = vector.shape_cast %47 : vector<16xf32> to vector<16x1xf32>
    %cst_22 = arith.constant 4.000000e+01 : f32
    %49 = vector.broadcast %cst_22 : f32 to vector<16x1xf32>
    %50 = arith.divf %48, %49 : vector<16x1xf32>
    %51 = vector.broadcast %50 : vector<16x1xf32> to vector<16x40xf32>
    %52 = arith.subf %46, %51 : vector<16x40xf32>
    %53 = arith.mulf %52, %52 : vector<16x40xf32>
    %cst_23 = arith.constant dense<0.000000e+00> : vector<16xf32>
    %54 = vector.multi_reduction <add>, %53, %cst_23 [1] : vector<16x40xf32> to vector<16xf32>
    %55 = vector.shape_cast %54 : vector<16xf32> to vector<16x1xf32>
    %cst_24 = arith.constant 4.000000e+01 : f32
    %56 = vector.broadcast %cst_24 : f32 to vector<16x1xf32>
    %57 = arith.divf %55, %56 : vector<16x1xf32>
    %58 = vector.broadcast %50 : vector<16x1xf32> to vector<16x40xf32>
    %59 = arith.subf %46, %58 : vector<16x40xf32>
    %cst_25 = arith.constant 9.99999974E-6 : f32
    %60 = vector.broadcast %cst_25 : f32 to vector<16x1xf32>
    %61 = arith.addf %57, %60 : vector<16x1xf32>
    %62 = math.rsqrt %61 : vector<16x1xf32>
    %63 = vector.broadcast %62 : vector<16x1xf32> to vector<16x40xf32>
    %64 = arith.mulf %59, %63 : vector<16x40xf32>
    %65 = vector.broadcast %44 : vector<1x40xf32> to vector<16x40xf32>
    %66 = arith.mulf %64, %65 : vector<16x40xf32>
    %67 = vector.broadcast %45 : vector<1x40xf32> to vector<16x40xf32>
    %68 = arith.addf %66, %67 : vector<16x40xf32>
    %c80 = arith.constant 80 : index
    %c0_26 = arith.constant 0 : index
    %69 = vector.load %arg1[%c80, %c0_26] : memref<504x128xf32, #tpu.memory_space<vmem>>, vector<40x64xf32>
    %c37 = arith.constant 37 : index
    %c0_27 = arith.constant 0 : index
    %70 = vector.load %arg2[%c37, %c0_27] : memref<48x128xf32, #tpu.memory_space<vmem>>, vector<1x64xf32>
    %c120 = arith.constant 120 : index
    %c0_28 = arith.constant 0 : index
    %71 = vector.load %arg1[%c120, %c0_28] : memref<504x128xf32, #tpu.memory_space<vmem>>, vector<64x40xf32>
    %c38 = arith.constant 38 : index
    %c0_29 = arith.constant 0 : index
    %72 = vector.load %arg2[%c38, %c0_29] : memref<48x128xf32, #tpu.memory_space<vmem>>, vector<1x40xf32>
    %cst_30 = arith.constant dense<0.000000e+00> : vector<16x64xf32>
    %73 = tpu.matmul %68, %69, %cst_30 {dimension_numbers = #tpu.dot_dimension_numbers<[1], [0], [0], [1], [0, 0, 1, 1], [], []>} : vector<16x40xf32>, vector<40x64xf32>, vector<16x64xf32> -> vector<16x64xf32>
    %74 = vector.broadcast %70 : vector<1x64xf32> to vector<16x64xf32>
    %75 = arith.addf %73, %74 : vector<16x64xf32>
    %cst_31 = arith.constant 0.000000e+00 : f32
    %76 = vector.broadcast %cst_31 : f32 to vector<16x64xf32>
    %77 = arith.maximumf %75, %76 : vector<16x64xf32>
    %cst_32 = arith.constant dense<0.000000e+00> : vector<16x40xf32>
    %78 = tpu.matmul %77, %71, %cst_32 {dimension_numbers = #tpu.dot_dimension_numbers<[1], [0], [0], [1], [0, 0, 1, 1], [], []>} : vector<16x64xf32>, vector<64x40xf32>, vector<16x40xf32> -> vector<16x40xf32>
    %79 = vector.broadcast %72 : vector<1x40xf32> to vector<16x40xf32>
    %80 = arith.addf %78, %79 : vector<16x40xf32>
    %c39 = arith.constant 39 : index
    %c0_33 = arith.constant 0 : index
    %81 = vector.load %arg2[%c39, %c0_33] : memref<48x128xf32, #tpu.memory_space<vmem>>, vector<1x40xf32>
    %c40_34 = arith.constant 40 : index
    %c0_35 = arith.constant 0 : index
    %82 = vector.load %arg2[%c40_34, %c0_35] : memref<48x128xf32, #tpu.memory_space<vmem>>, vector<1x40xf32>
    %83 = arith.addf %68, %80 : vector<16x40xf32>
    %cst_36 = arith.constant dense<0.000000e+00> : vector<16xf32>
    %84 = vector.multi_reduction <add>, %83, %cst_36 [1] : vector<16x40xf32> to vector<16xf32>
    %85 = vector.shape_cast %84 : vector<16xf32> to vector<16x1xf32>
    %cst_37 = arith.constant 4.000000e+01 : f32
    %86 = vector.broadcast %cst_37 : f32 to vector<16x1xf32>
    %87 = arith.divf %85, %86 : vector<16x1xf32>
    %88 = vector.broadcast %87 : vector<16x1xf32> to vector<16x40xf32>
    %89 = arith.subf %83, %88 : vector<16x40xf32>
    %90 = arith.mulf %89, %89 : vector<16x40xf32>
    %cst_38 = arith.constant dense<0.000000e+00> : vector<16xf32>
    %91 = vector.multi_reduction <add>, %90, %cst_38 [1] : vector<16x40xf32> to vector<16xf32>
    %92 = vector.shape_cast %91 : vector<16xf32> to vector<16x1xf32>
    %cst_39 = arith.constant 4.000000e+01 : f32
    %93 = vector.broadcast %cst_39 : f32 to vector<16x1xf32>
    %94 = arith.divf %92, %93 : vector<16x1xf32>
    %95 = vector.broadcast %87 : vector<16x1xf32> to vector<16x40xf32>
    %96 = arith.subf %83, %95 : vector<16x40xf32>
    %cst_40 = arith.constant 9.99999974E-6 : f32
    %97 = vector.broadcast %cst_40 : f32 to vector<16x1xf32>
    %98 = arith.addf %94, %97 : vector<16x1xf32>
    %99 = math.rsqrt %98 : vector<16x1xf32>
    %100 = vector.broadcast %99 : vector<16x1xf32> to vector<16x40xf32>
    %101 = arith.mulf %96, %100 : vector<16x40xf32>
    %102 = vector.broadcast %81 : vector<1x40xf32> to vector<16x40xf32>
    %103 = arith.mulf %101, %102 : vector<16x40xf32>
    %104 = vector.broadcast %82 : vector<1x40xf32> to vector<16x40xf32>
    %105 = arith.addf %103, %104 : vector<16x40xf32>
    %c41 = arith.constant 41 : index
    %c0_41 = arith.constant 0 : index
    %106 = vector.load %arg2[%c41, %c0_41] : memref<48x128xf32, #tpu.memory_space<vmem>>, vector<1x40xf32>
    %c42 = arith.constant 42 : index
    %c0_42 = arith.constant 0 : index
    %107 = vector.load %arg2[%c42, %c0_42] : memref<48x128xf32, #tpu.memory_space<vmem>>, vector<1x1xf32>
    %108 = vector.broadcast %106 : vector<1x40xf32> to vector<16x40xf32>
    %109 = arith.mulf %105, %108 : vector<16x40xf32>
    %cst_43 = arith.constant dense<0.000000e+00> : vector<16xf32>
    %110 = vector.multi_reduction <add>, %109, %cst_43 [1] : vector<16x40xf32> to vector<16xf32>
    %111 = vector.shape_cast %110 : vector<16xf32> to vector<16x1xf32>
    %112 = vector.broadcast %107 : vector<1x1xf32> to vector<16x1xf32>
    %113 = arith.addf %111, %112 : vector<16x1xf32>
    %cst_44 = arith.constant 0.000000e+00 : f32
    %114 = vector.broadcast %cst_44 : f32 to vector<16x1xf32>
    %115 = arith.cmpf oge, %113, %114 : vector<16x1xf32>
    %cst_45 = arith.constant 0.00999999977 : f32
    %116 = vector.broadcast %cst_45 : f32 to vector<16x1xf32>
    %117 = arith.mulf %116, %113 : vector<16x1xf32>
    %118 = arith.select %115, %113, %117 : vector<16x1xi1>, vector<16x1xf32>
    %c0_46 = arith.constant 0 : index
    %c0_47 = arith.constant 0 : index
    %119 = vector.load %arg3[%c0_46, %c0_47] : memref<16x1xf32, #tpu.memory_space<vmem>>, vector<16x1xf32>
    tpu.vector_store %arg3[%c0_46, %c0_47], %118 {strides = array<i32>} : memref<16x1xf32, #tpu.memory_space<vmem>>, vector<16x1xf32>,
    return
  }
}

</mosaic_0001>

<llo_original>
// kernel: tpu_custom_call.1
$region0: #{tpu_custom_call.1}
  #allocation0 [shape = 'u32[]', space=smem, size = 0x4, offset = 0x4, fixed_abs, tag = 'smem constant byte address 0x4 - core index']
  #allocation1 [shape = 'u32[144,128]{1,0:T(1,128)}', space=vmem, size = 0x12000, scoped, tag = 'internal scratch']
  %s0 = inlined_call_operand.vmem [shape: f32[16,1], index: 0, kind: input, shape index: {}]
  %s1 = inlined_call_operand.hbm [shape: f32[504,128], index: 1, kind: input, shape index: {}]
  %s2 = inlined_call_operand.hbm [shape: f32[48,128], index: 2, kind: input, shape index: {}]
  %s3 = inlined_call_operand.vmem [shape: f32[16,1], index: 3, kind: output, shape index: {}]
  %s4 = sld [smem:[#allocation0]]
  $region30: #{tpu_custom_call.1} parent=0
    _
  %s6 = ssub.s32 1, %s4
  %s7 = scalar_select 0, %s6, %s4
  $region1: #{tpu_custom_call.1} parent=0
    #allocation2 [shape = 'u8[258048]{0}', space=vmem, size = 0x3f000, scoped, tag = 'input window, operand 1, single buffered']
    #allocation3 [shape = 's32[1]{0}', space=sflag, size = 0x4, scoped, tag = 'scoped memory for tpu_custom_call.1']
    #allocation4 [shape = 'u8[24576]{0}', space=vmem, size = 0x6000, scoped, tag = 'input window, operand 2, single buffered']
    #allocation5 [shape = 's32[1]{0}', space=sflag, size = 0x4, scoped, tag = 'scoped memory for tpu_custom_call.1']
    %8 = vsyncpa [#allocation3], 0
    %9 = vsyncpa [#allocation5], 0
    // Predicated region
    $region2: #{tpu_custom_call.1} parent=1 // pred_check
      _
    $region3: #{tpu_custom_call.1} parent=1 // pred_check_branch
      %11 = sbr.rel (0) target = $region5
    $region4: #{tpu_custom_call.1} parent=1 // pred_region
      _
    $region5: #{tpu_custom_call.1} parent=1 // pred_fallthru
      _
    // Predicated region
    $region6: #{tpu_custom_call.1} parent=1 // pred_check
      _
    $region7: #{tpu_custom_call.1} parent=1 // pred_check_branch
      %13 = sbr.rel (0) target = $region9
    $region8: #{tpu_custom_call.1} parent=1 // pred_region
      %s15 = ssub.s32 8064, 8064
      %16 = vsyncadd [#allocation3], %s15
      %s17 = sshll.u32 [#allocation2], 4
      %s18 = int_to_ptr.vmem [resolvable:$true] %s17
      %23 = dma.hbm_to_vmem [thread:$0]  %s1, 8064, %s18, [#allocation3], 128, 128, 8
    $region9: #{tpu_custom_call.1} parent=1 // pred_fallthru
      _
    // Predicated region
    $region10: #{tpu_custom_call.1} parent=1 // pred_check
      _
    $region11: #{tpu_custom_call.1} parent=1 // pred_check_branch
      %25 = sbr.rel (0) target = $region13
    $region12: #{tpu_custom_call.1} parent=1 // pred_region
      %s27 = ssub.s32 768, 768
      %28 = vsyncadd [#allocation5], %s27
      %s29 = sshll.u32 [#allocation4], 4
      %s30 = int_to_ptr.vmem [resolvable:$true] %s29
      %35 = dma.hbm_to_vmem [thread:$0]  %s2, 768, %s30, [#allocation5], 128, 128, 8
    $region13: #{tpu_custom_call.1} parent=1 // pred_fallthru
      _
    // Predicated region
    $region14: #{tpu_custom_call.1} parent=1 // pred_check
      _
    $region15: #{tpu_custom_call.1} parent=1 // pred_check_branch
      %37 = sbr.rel (0) target = $region17
    $region16: #{tpu_custom_call.1} parent=1 // pred_region
      %38 = dma.done [#allocation3], 8064
    $region17: #{tpu_custom_call.1} parent=1 // pred_fallthru
      _
    // Predicated region
    $region18: #{tpu_custom_call.1} parent=1 // pred_check
      _
    $region19: #{tpu_custom_call.1} parent=1 // pred_check_branch
      %40 = sbr.rel (0) target = $region21
    $region20: #{tpu_custom_call.1} parent=1 // pred_region
      %41 = dma.done [#allocation5], 768
    $region21: #{tpu_custom_call.1} parent=1 // pred_fallthru
      _
    %v42 = vld [vmem:[%s0] sm:$0xff]
    %v43 = vld [vmem:[%s0 + $0x8] sm:$0xff]
    %v44 = vld [vmem:[#allocation4] sm:$0xff]
    %v45 = vld [vmem:[#allocation4 + $0x8] sm:$0xff]
    %v46 = vld [vmem:[#allocation4 + $0x20] sm:$0x1]
    %48 = vset.pattern.permute.xlu0 0
    %49 = vperm.xlu0 %48, %v42
    %v50 = vpop.permute.xlu0 %49
    %53 = vset.pattern.permute.xlu0 0
    %54 = vperm.xlu0 %53, %v43
    %v55 = vpop.permute.xlu0 %54
    %v57 = vmul.f32 %v50, %v44
    %v58 = vmul.f32 %v55, %v45
    %v59 = vlaneseq
    %v60 = vshrl.u32 %v59, 7
    %v61 = vsub.s32 0, %v60
    %v62 = vrot.slane %v46, %v61
    %v63 = vadd.f32 %v57, %v62
    %v64 = vadd.f32 %v58, %v62
    %v65 = vld [vmem:[#allocation4 + $0x10] sm:$0xff]
    %v66 = vld [vmem:[#allocation4 + $0x18] sm:$0xff]
    %v67 = vmul.f32 %v63, 2.0
    %v68 = vmul.f32 %v64, 2.0
    %v69 = vadd.f32 %v67, %v65
    %v70 = vadd.f32 %v68, %v66
    %v71 = vld [vmem:[#allocation2] sm:$0xff]
    %v72 = vld [vmem:[#allocation2 + $0x8] sm:$0xff]
    %v73 = vld [vmem:[#allocation2 + $0x10] sm:$0xff]
    %v74 = vld [vmem:[#allocation2 + $0x18] sm:$0xff]
    %v75 = vld [vmem:[#allocation2 + $0x20] sm:$0xff]
    %v76 = vld [vmem:[#allocation4 + $0x21] sm:$0x1]
    %v77 = vlaneseq
    %v78 = vshrl.u32 %v77, 7
    %v79 = vsub.s32 0, %v78
    %v80 = vrot.slane %v76, %v79
    %vm81 = vcmask 326656
    %v83 = vsel %vm81, %v69, 0
    %v86 = vsel %vm81, %v70, 0
    %88 = vmatprep.subr.mxu0 0.0
    %89 = vmatpush1.msra.mxu0 %v71
    %90 = vmatprep.subr.mxu0 0.0
    %91 = vmatpush1.msra.mxu0 %v72
    %92 = vmatprep.subr.mxu0 0.0
    %93 = vmatpush1.msra.mxu0 %v73
    %94 = vmatprep.subr.mxu0 0.0
    %95 = vmatpush1.msra.mxu0 %v74
    %96 = vmatprep.subr.mxu0 0.0
    %97 = vmatpush1.msra.mxu0 %v75
    %98 = vmatprep.subr.mxu0 0.0
    %99 = vmatpush1.msra.mxu0 0.0
    %100 = vmatprep.subr.mxu0 0.0
    %101 = vmatpush1.msra.mxu0 0.0
    %102 = vmatprep.subr.mxu0 0.0
    %103 = vmatpush1.msra.mxu0 0.0
    %104 = vmatprep.subr.mxu0 0.0
    %105 = vmatpush1.msra.mxu0 0.0
    %106 = vmatprep.subr.mxu0 0.0
    %107 = vmatpush1.msra.mxu0 0.0
    %108 = vmatprep.subr.mxu0 0.0
    %109 = vmatpush1.msra.mxu0 0.0
    %110 = vmatprep.subr.mxu0 0.0
    %111 = vmatpush1.msra.mxu0 0.0
    %112 = vmatprep.subr.mxu0 0.0
    %113 = vmatpush1.msra.mxu0 0.0
    %114 = vmatprep.subr.mxu0 0.0
    %115 = vmatpush1.msra.mxu0 0.0
    %116 = vmatprep.subr.mxu0 0.0
    %117 = vmatpush1.msra.mxu0 0.0
    %118 = vmatprep.subr.mxu0 0.0
    %119 = vmatpush1.msra.mxu0 0.0
    %120 = vmatprep.subr.mxu0 0.0
    %121 = vmatpush1.msra.mxu0 0.0
    %122 = vmatprep.subr.mxu0 0.0
    %123 = vmatpush1.msra.mxu0 0.0
    %124 = vmatprep.subr.mxu0 0.0
    %125 = vmatpush1.msra.mxu0 0.0
    %126 = vmatprep.subr.mxu0 0.0
    %127 = vmatpush1.msra.mxu0 0.0
    %128 = vmatprep.subr.mxu0 0.0
    %129 = vmatpush1.msra.mxu0 0.0
    %130 = vmatprep.subr.mxu0 0.0
    %131 = vmatpush1.msra.mxu0 0.0
    %132 = vmatprep.subr.mxu0 0.0
    %133 = vmatpush1.msra.mxu0 0.0
    %134 = vmatprep.subr.mxu0 0.0
    %135 = vmatpush1.msra.mxu0 0.0
    %136 = vmatprep.subr.mxu0 0.0
    %137 = vmatpush1.msra.mxu0 0.0
    %138 = vmatprep.subr.mxu0 0.0
    %139 = vmatpush1.msra.mxu0 0.0
    %140 = vmatprep.subr.mxu0 0.0
    %141 = vmatpush1.msra.mxu0 0.0
    %142 = vmatprep.subr.mxu0 0.0
    %143 = vmatpush1.msra.mxu0 0.0
    %144 = vmatprep.subr.mxu0 0.0
    %145 = vmatpush1.msra.mxu0 0.0
    %146 = vmatprep.subr.mxu0 0.0
    %147 = vmatpush1.msra.mxu0 0.0
    %148 = vmatprep.subr.mxu0 0.0
    %149 = vmatpush1.msra.mxu0 0.0
    %150 = vmatprep.subr.mxu0 0.0
    %151 = vmatpush1.msra.mxu0 0.0
    %152 = vmatprep.mubr.f32.mxu0 0.0
    %153 = vmatmul.mubr.f32.gmra.mrb[0].mxu0 %v83
    %v154 = vpop.f32.mrb[0].mxu0
    %v155 = vadd.f32 %v80, %v154
    %v156 = vpop.f32.mrb[0].mxu0
    %157 = vmatprep.mubr.f32.mxu0 0.0
    %158 = vmatmul.mubr.f32.gmra.mrb[0].mxu0 %v86
    %v159 = vpop.f32.mrb[0].mxu0
    %v160 = vadd.f32 %v80, %v159
    %v161 = vpop.f32.mrb[0].mxu0
    %162 = vdwg.mxu0
    %v163 = vld [vmem:[#allocation2 + $0xb8] sm:$0xff]
    %v164 = vld [vmem:[#allocation2 + $0xc0] sm:$0xff]
    %v165 = vld [vmem:[#allocation2 + $0xc8] sm:$0xff]
    %v166 = vld [vmem:[#allocation2 + $0xd0] sm:$0xff]
    %v167 = vld [vmem:[#allocation2 + $0xd8] sm:$0xff]
    %v168 = vld [vmem:[#allocation2 + $0xe0] sm:$0xff]
    %v169 = vld [vmem:[#allocation2 + $0xe8] sm:$0xff]
    %v170 = vld [vmem:[#allocation2 + $0xf0] sm:$0xff]
    %v171 = vld [vmem:[#allocation2 + $0xf8] sm:$0xff]
    %v172 = vld [vmem:[#allocation2 + $0x100] sm:$0xff]
    %v173 = vld [vmem:[#allocation2 + $0x108] sm:$0xff]
    %v174 = vld [vmem:[#allocation2 + $0x110] sm:$0xff]
    %v175 = vld [vmem:[#allocation2 + $0x118] sm:$0xff]
    %v176 = vld [vmem:[#allocation2 + $0x120] sm:$0xff]
    %v177 = vld [vmem:[#allocation2 + $0x128] sm:$0xff]
    %v178 = vld [vmem:[#allocation2 + $0x130] sm:$0xff]
    %v179 = vld [vmem:[#allocation2 + $0x138] sm:$0xff]
    %v180 = vld [vmem:[#allocation2 + $0x140] sm:$0xff]
    %v181 = vld [vmem:[#allocation2 + $0x148] sm:$0xff]
    %v182 = vld [vmem:[#allocation2 + $0x150] sm:$0xff]
    %v183 = vld [vmem:[#allocation2 + $0x158] sm:$0xff]
    %v184 = vld [vmem:[#allocation2 + $0x160] sm:$0xff]
    %v185 = vld [vmem:[#allocation2 + $0x168] sm:$0xff]
    %v186 = vld [vmem:[#allocation2 + $0x170] sm:$0xff]
    %v187 = vld [vmem:[#allocation2 + $0x178] sm:$0xff]
    %v188 = vld [vmem:[#allocation2 + $0x180] sm:$0xff]
    %v189 = vld [vmem:[#allocation2 + $0x188] sm:$0xff]
    %v190 = vld [vmem:[#allocation2 + $0x190] sm:$0xff]
    %v191 = vld [vmem:[#allocation2 + $0x198] sm:$0xff]
    %v192 = vld [vmem:[#allocation2 + $0x1a0] sm:$0xff]
    %v193 = vld [vmem:[#allocation2 + $0x1a8] sm:$0xff]
    %v194 = vld [vmem:[#allocation2 + $0x1b0] sm:$0xff]
    %v195 = vld [vmem:[#allocation2 + $0x1b8] sm:$0xff]
    %v196 = vld [vmem:[#allocation2 + $0x1c0] sm:$0xff]
    %v197 = vld [vmem:[#allocation2 + $0x1c8] sm:$0xff]
    %v198 = vld [vmem:[#allocation2 + $0x1d0] sm:$0xff]
    %v199 = vld [vmem:[#allocation2 + $0x1d8] sm:$0xff]
    %v200 = vld [vmem:[#allocation2 + $0x1e0] sm:$0xff]
    %v201 = vld [vmem:[#allocation2 + $0x1e8] sm:$0xff]
    %v202 = vld [vmem:[#allocation2 + $0x1f0] sm:$0xff]
    %v203 = vmul.f32 %v155, %v163
    %v204 = vmul.f32 %v160, %v164
    %v205 = vmul.f32 %v155, %v165
    %v206 = vmul.f32 %v160, %v166
    %v207 = vmul.f32 %v155, %v167
    %v208 = vmul.f32 %v160, %v168
    %v209 = vmul.f32 %v155, %v169
    %v210 = vmul.f32 %v160, %v170
    %v211 = vmul.f32 %v155, %v171
    %v212 = vmul.f32 %v160, %v172
    %v213 = vmul.f32 %v155, %v173
    %v214 = vmul.f32 %v160, %v174
    %v215 = vmul.f32 %v155, %v175
    %v216 = vmul.f32 %v160, %v176
    %v217 = vmul.f32 %v155, %v177
    %v218 = vmul.f32 %v160, %v178
    %v219 = vmul.f32 %v155, %v179
    %v220 = vmul.f32 %v160, %v180
    %v221 = vmul.f32 %v155, %v181
    %v222 = vmul.f32 %v160, %v182
    %225 = vrot.lane.b32.xlu0 %v155, 88
    %v226 = vpop.permute.xlu0 %225
    %227 = vrot.lane.b32.xlu0 %v160, 88
    %v228 = vpop.permute.xlu0 %227
    %v230 = vsel %vm81, %v203, 0
    %v233 = vsel %vm81, %v204, 0
    %v236 = vsel %vm81, %v205, 0
    %v239 = vsel %vm81, %v206, 0
    %v242 = vsel %vm81, %v207, 0
    %v245 = vsel %vm81, %v208, 0
    %v248 = vsel %vm81, %v209, 0
    %v251 = vsel %vm81, %v210, 0
    %v254 = vsel %vm81, %v211, 0
    %v257 = vsel %vm81, %v212, 0
    %v260 = vsel %vm81, %v213, 0
    %v263 = vsel %vm81, %v214, 0
    %v266 = vsel %vm81, %v215, 0
    %v269 = vsel %vm81, %v216, 0
    %v272 = vsel %vm81, %v217, 0
    %v275 = vsel %vm81, %v218, 0
    %v278 = vsel %vm81, %v219, 0
    %v281 = vsel %vm81, %v220, 0
    %v284 = vsel %vm81, %v221, 0
    %v287 = vsel %vm81, %v222, 0
    %v289 = vsel %vm81, %v226, 0
    %v291 = vsel %vm81, %v228, 0
    %293 = vmatprep.subr.mxu0 0.0
    %294 = vmatpush1.xpose.msra.mxu0 %v289
    %295 = vmatprep.subr.mxu0 0.0
    %296 = vmatpush1.xpose.msra.mxu0 %v291
    %297 = vmatprep.subr.mxu0 0.0
    %298 = vmatpush1.xpose.msra.mxu0 0.0
    %299 = vmatprep.subr.mxu0 0.0
    %300 = vmatpush1.xpose.msra.mxu0 0.0
    %301 = vmatprep.subr.mxu0 0.0
    %302 = vmatpush1.xpose.msra.mxu0 0.0
    %303 = vmatprep.subr.mxu0 0.0
    %304 = vmatpush1.xpose.msra.mxu0 0.0
    %305 = vmatprep.subr.mxu0 0.0
    %306 = vmatpush1.xpose.msra.mxu0 0.0
    %307 = vmatprep.subr.mxu0 0.0
    %308 = vmatpush1.xpose.msra.mxu0 0.0
    %309 = vmatprep.subr.mxu0 0.0
    %310 = vmatpush1.xpose.msra.mxu0 0.0
    %311 = vmatprep.subr.mxu0 0.0
    %312 = vmatpush1.xpose.msra.mxu0 0.0
    %313 = vmatprep.subr.mxu0 0.0
    %314 = vmatpush1.xpose.msra.mxu0 0.0
    %315 = vmatprep.subr.mxu0 0.0
    %316 = vmatpush1.xpose.msra.mxu0 0.0
    %317 = vmatprep.subr.mxu0 0.0
    %318 = vmatpush1.xpose.msra.mxu0 0.0
    %319 = vmatprep.subr.mxu0 0.0
    %320 = vmatpush1.xpose.msra.mxu0 0.0
    %321 = vmatprep.subr.mxu0 0.0
    %322 = vmatpush1.xpose.msra.mxu0 0.0
    %323 = vmatprep.subr.mxu0 0.0
    %324 = vmatpush1.xpose.msra.mxu0 0.0
    %325 = vmatprep.subr.mxu0 0.0
    %326 = vmatpush1.xpose.msra.mxu0 0.0
    %327 = vmatprep.subr.mxu0 0.0
    %328 = vmatpush1.xpose.msra.mxu0 0.0
    %329 = vmatprep.subr.mxu0 0.0
    %330 = vmatpush1.xpose.msra.mxu0 0.0
    %331 = vmatprep.subr.mxu0 0.0
    %332 = vmatpush1.xpose.msra.mxu0 0.0
    %333 = vmatprep.subr.mxu0 0.0
    %334 = vmatpush1.xpose.msra.mxu0 0.0
    %335 = vmatprep.subr.mxu0 0.0
    %336 = vmatpush1.xpose.msra.mxu0 0.0
    %337 = vmatprep.subr.mxu0 0.0
    %338 = vmatpush1.xpose.msra.mxu0 0.0
    %339 = vmatprep.subr.mxu0 0.0
    %340 = vmatpush1.xpose.msra.mxu0 0.0
    %341 = vmatprep.subr.mxu0 0.0
    %342 = vmatpush1.xpose.msra.mxu0 0.0
    %343 = vmatprep.subr.mxu0 0.0
    %344 = vmatpush1.xpose.msra.mxu0 0.0
    %345 = vmatprep.subr.mxu0 0.0
    %346 = vmatpush1.xpose.msra.mxu0 0.0
    %347 = vmatprep.subr.mxu0 0.0
    %348 = vmatpush1.xpose.msra.mxu0 0.0
    %349 = vmatprep.subr.mxu0 0.0
    %350 = vmatpush1.xpose.msra.mxu0 0.0
    %351 = vmatprep.subr.mxu0 0.0
    %352 = vmatpush1.xpose.msra.mxu0 0.0
    %353 = vmatprep.subr.mxu0 0.0
    %354 = vmatpush1.xpose.msra.mxu0 0.0
    %355 = vmatprep.subr.mxu0 0.0
    %356 = vmatpush1.xpose.msra.mxu0 0.0
    %357 = vmatprep.mubr.f32.mxu0 0.0
    %358 = vmatmul.mubr.f32.gmra.mrb[0].mxu0 %v230
    %v359 = vpop.f32.mrb[0].mxu0
    %v360 = vadd.f32 %v183, %v359
    %v361 = vpop.f32.mrb[0].mxu0
    %362 = vmatprep.mubr.f32.mxu0 0.0
    %363 = vmatmul.mubr.f32.gmra.mrb[0].mxu0 %v233
    %v364 = vpop.f32.mrb[0].mxu0
    %v365 = vadd.f32 %v184, %v364
    %v366 = vpop.f32.mrb[0].mxu0
    %367 = vmatprep.mubr.f32.mxu0 0.0
    %368 = vmatmul.mubr.f32.gmra.mrb[0].mxu0 %v236
    %v369 = vpop.f32.mrb[0].mxu0
    %v370 = vadd.f32 %v185, %v369
    %v371 = vpop.f32.mrb[0].mxu0
    %372 = vmatprep.mubr.f32.mxu0 0.0
    %373 = vmatmul.mubr.f32.gmra.mrb[0].mxu0 %v239
    %v374 = vpop.f32.mrb[0].mxu0
    %v375 = vadd.f32 %v186, %v374
    %v376 = vpop.f32.mrb[0].mxu0
    %377 = vmatprep.mubr.f32.mxu0 0.0
    %378 = vmatmul.mubr.f32.gmra.mrb[0].mxu0 %v242
    %v379 = vpop.f32.mrb[0].mxu0
    %v380 = vadd.f32 %v187, %v379
    %v381 = vpop.f32.mrb[0].mxu0
    %382 = vmatprep.mubr.f32.mxu0 0.0
    %383 = vmatmul.mubr.f32.gmra.mrb[0].mxu0 %v245
    %v384 = vpop.f32.mrb[0].mxu0
    %v385 = vadd.f32 %v188, %v384
    %v386 = vpop.f32.mrb[0].mxu0
    %387 = vmatprep.mubr.f32.mxu0 0.0
    %388 = vmatmul.mubr.f32.gmra.mrb[0].mxu0 %v248
    %v389 = vpop.f32.mrb[0].mxu0
    %v390 = vadd.f32 %v189, %v389
    %v391 = vpop.f32.mrb[0].mxu0
    %392 = vmatprep.mubr.f32.mxu0 0.0
    %393 = vmatmul.mubr.f32.gmra.mrb[0].mxu0 %v251
    %v394 = vpop.f32.mrb[0].mxu0
    %v395 = vadd.f32 %v190, %v394
    %v396 = vpop.f32.mrb[0].mxu0
    %397 = vmatprep.mubr.f32.mxu0 0.0
    %398 = vmatmul.mubr.f32.gmra.mrb[0].mxu0 %v254
    %v399 = vpop.f32.mrb[0].mxu0
    %v400 = vadd.f32 %v191, %v399
    %v401 = vpop.f32.mrb[0].mxu0
    %402 = vmatprep.mubr.f32.mxu0 0.0
    %403 = vmatmul.mubr.f32.gmra.mrb[0].mxu0 %v257
    %v404 = vpop.f32.mrb[0].mxu0
    %v405 = vadd.f32 %v192, %v404
    %v406 = vpop.f32.mrb[0].mxu0
    %407 = vmatprep.mubr.f32.mxu0 0.0
    %408 = vmatmul.mubr.f32.gmra.mrb[0].mxu0 %v260
    %v409 = vpop.f32.mrb[0].mxu0
    %v410 = vadd.f32 %v193, %v409
    %v411 = vpop.f32.mrb[0].mxu0
    %412 = vmatprep.mubr.f32.mxu0 0.0
    %413 = vmatmul.mubr.f32.gmra.mrb[0].mxu0 %v263
    %v414 = vpop.f32.mrb[0].mxu0
    %v415 = vadd.f32 %v194, %v414
    %v416 = vpop.f32.mrb[0].mxu0
    %417 = vmatprep.mubr.f32.mxu0 0.0
    %418 = vmatmul.mubr.f32.gmra.mrb[0].mxu0 %v266
    %v419 = vpop.f32.mrb[0].mxu0
    %v420 = vadd.f32 %v195, %v419
    %v421 = vpop.f32.mrb[0].mxu0
    %422 = vmatprep.mubr.f32.mxu0 0.0
    %423 = vmatmul.mubr.f32.gmra.mrb[0].mxu0 %v269
    %v424 = vpop.f32.mrb[0].mxu0
    %v425 = vadd.f32 %v196, %v424
    %v426 = vpop.f32.mrb[0].mxu0
    %427 = vmatprep.mubr.f32.mxu0 0.0
    %428 = vmatmul.mubr.f32.gmra.mrb[0].mxu0 %v272
    %v429 = vpop.f32.mrb[0].mxu0
    %v430 = vadd.f32 %v197, %v429
    %v431 = vpop.f32.mrb[0].mxu0
    %432 = vmatprep.mubr.f32.mxu0 0.0
    %433 = vmatmul.mubr.f32.gmra.mrb[0].mxu0 %v275
    %v434 = vpop.f32.mrb[0].mxu0
    %v435 = vadd.f32 %v198, %v434
    %v436 = vpop.f32.mrb[0].mxu0
    %437 = vmatprep.mubr.f32.mxu0 0.0
    %438 = vmatmul.mubr.f32.gmra.mrb[0].mxu0 %v278
    %v439 = vpop.f32.mrb[0].mxu0
    %v440 = vadd.f32 %v199, %v439
    %v441 = vpop.f32.mrb[0].mxu0
    %442 = vmatprep.mubr.f32.mxu0 0.0
    %443 = vmatmul.mubr.f32.gmra.mrb[0].mxu0 %v281
    %v444 = vpop.f32.mrb[0].mxu0
    %v445 = vadd.f32 %v200, %v444
    %v446 = vpop.f32.mrb[0].mxu0
    %447 = vmatprep.mubr.f32.mxu0 0.0
    %448 = vmatmul.mubr.f32.gmra.mrb[0].mxu0 %v284
    %v449 = vpop.f32.mrb[0].mxu0
    %v450 = vadd.f32 %v201, %v449
    %v451 = vpop.f32.mrb[0].mxu0
    %452 = vmatprep.mubr.f32.mxu0 0.0
    %453 = vmatmul.mubr.f32.gmra.mrb[0].mxu0 %v287
    %v454 = vpop.f32.mrb[0].mxu0
    %v455 = vadd.f32 %v202, %v454
    %v456 = vpop.f32.mrb[0].mxu0
    %457 = vdwg.mxu0
    %vm458 = vcmask 130048
    %v459 = vsel %vm458, %v360, -inf
    %460 = vmax.xlane.f32.xlu0 %v459
    %v461 = vpop.xlane.xlu0 %460
    %v462 = vsel %vm458, %v365, -inf
    %463 = vmax.xlane.f32.xlu0 %v462
    %v464 = vpop.xlane.xlu0 %463
    %v465 = vsel %vm458, %v370, -inf
    %466 = vmax.xlane.f32.xlu0 %v465
    %v467 = vpop.xlane.xlu0 %466
    %v468 = vsel %vm458, %v375, -inf
    %469 = vmax.xlane.f32.xlu0 %v468
    %v470 = vpop.xlane.xlu0 %469
    %v471 = vsel %vm458, %v380, -inf
    %472 = vmax.xlane.f32.xlu0 %v471
    %v473 = vpop.xlane.xlu0 %472
    %v474 = vsel %vm458, %v385, -inf
    %475 = vmax.xlane.f32.xlu0 %v474
    %v476 = vpop.xlane.xlu0 %475
    %v477 = vsel %vm458, %v390, -inf
    %478 = vmax.xlane.f32.xlu0 %v477
    %v479 = vpop.xlane.xlu0 %478
    %v480 = vsel %vm458, %v395, -inf
    %481 = vmax.xlane.f32.xlu0 %v480
    %v482 = vpop.xlane.xlu0 %481
    %v483 = vsel %vm458, %v400, -inf
    %484 = vmax.xlane.f32.xlu0 %v483
    %v485 = vpop.xlane.xlu0 %484
    %v486 = vsel %vm458, %v405, -inf
    %487 = vmax.xlane.f32.xlu0 %v486
    %v488 = vpop.xlane.xlu0 %487
    %v489 = vsel %vm458, %v410, -inf
    %490 = vmax.xlane.f32.xlu0 %v489
    %v491 = vpop.xlane.xlu0 %490
    %v492 = vsel %vm458, %v415, -inf
    %493 = vmax.xlane.f32.xlu0 %v492
    %v494 = vpop.xlane.xlu0 %493
    %v495 = vsel %vm458, %v420, -inf
    %496 = vmax.xlane.f32.xlu0 %v495
    %v497 = vpop.xlane.xlu0 %496
    %v498 = vsel %vm458, %v425, -inf
    %499 = vmax.xlane.f32.xlu0 %v498
    %v500 = vpop.xlane.xlu0 %499
    %v501 = vsel %vm458, %v430, -inf
    %502 = vmax.xlane.f32.xlu0 %v501
    %v503 = vpop.xlane.xlu0 %502
    %v504 = vsel %vm458, %v435, -inf
    %505 = vmax.xlane.f32.xlu0 %v504
    %v506 = vpop.xlane.xlu0 %505
    %v507 = vsel %vm458, %v440, -inf
    %508 = vmax.xlane.f32.xlu0 %v507
    %v509 = vpop.xlane.xlu0 %508
    %v510 = vsel %vm458, %v445, -inf
    %511 = vmax.xlane.f32.xlu0 %v510
    %v512 = vpop.xlane.xlu0 %511
    %v513 = vsel %vm458, %v450, -inf
    %514 = vmax.xlane.f32.xlu0 %v513
    %v515 = vpop.xlane.xlu0 %514
    %v516 = vsel %vm458, %v455, -inf
    %517 = vmax.xlane.f32.xlu0 %v516
    %v518 = vpop.xlane.xlu0 %517
    %v519 = vsub.f32 %v360, %v461
    %v520 = vsub.f32 %v365, %v464
    %v521 = vsub.f32 %v370, %v467
    %v522 = vsub.f32 %v375, %v470
    %v523 = vsub.f32 %v380, %v473
    %v524 = vsub.f32 %v385, %v476
    %v525 = vsub.f32 %v390, %v479
    %v526 = vsub.f32 %v395, %v482
    %v527 = vsub.f32 %v400, %v485
    %v528 = vsub.f32 %v405, %v488
    %v529 = vsub.f32 %v410, %v491
    %v530 = vsub.f32 %v415, %v494
    %v531 = vsub.f32 %v420, %v497
    %v532 = vsub.f32 %v425, %v500
    %v533 = vsub.f32 %v430, %v503
    %v534 = vsub.f32 %v435, %v506
    %v535 = vsub.f32 %v440, %v509
    %v536 = vsub.f32 %v445, %v512
    %v537 = vsub.f32 %v450, %v515
    %v538 = vsub.f32 %v455, %v518
    %v539 = vmul.f32 %v519, 1.442695
    %v540 = vpow.pop %v539
    %v541 = vmul.f32 %v520, 1.442695
    %v542 = vpow.pop %v541
    %v543 = vmul.f32 %v521, 1.442695
    %v544 = vpow.pop %v543
    %v545 = vmul.f32 %v522, 1.442695
    %v546 = vpow.pop %v545
    %v547 = vmul.f32 %v523, 1.442695
    %v548 = vpow.pop %v547
    %v549 = vmul.f32 %v524, 1.442695
    %v550 = vpow.pop %v549
    %v551 = vmul.f32 %v525, 1.442695
    %v552 = vpow.pop %v551
    %v553 = vmul.f32 %v526, 1.442695
    %v554 = vpow.pop %v553
    %v555 = vmul.f32 %v527, 1.442695
    %v556 = vpow.pop %v555
    %v557 = vmul.f32 %v528, 1.442695
    %v558 = vpow.pop %v557
    %v559 = vmul.f32 %v529, 1.442695
    %v560 = vpow.pop %v559
    %v561 = vmul.f32 %v530, 1.442695
    %v562 = vpow.pop %v561
    %v563 = vmul.f32 %v531, 1.442695
    %v564 = vpow.pop %v563
    %v565 = vmul.f32 %v532, 1.442695
    %v566 = vpow.pop %v565
    %v567 = vmul.f32 %v533, 1.442695
    %v568 = vpow.pop %v567
    %v569 = vmul.f32 %v534, 1.442695
    %v570 = vpow.pop %v569
    %v571 = vmul.f32 %v535, 1.442695
    %v572 = vpow.pop %v571
    %v573 = vmul.f32 %v536, 1.442695
    %v574 = vpow.pop %v573
    %v575 = vmul.f32 %v537, 1.442695
    %v576 = vpow.pop %v575
    %v577 = vmul.f32 %v538, 1.442695
    %v578 = vpow.pop %v577
    %v579 = vsel %vm458, %v540, 0.0
    %580 = vadd.xlane.f32.xlu0 %v579
    %v581 = vpop.xlane.xlu0 %580
    %v582 = vsel %vm458, %v542, 0.0
    %583 = vadd.xlane.f32.xlu0 %v582
    %v584 = vpop.xlane.xlu0 %583
    %v585 = vsel %vm458, %v544, 0.0
    %586 = vadd.xlane.f32.xlu0 %v585
    %v587 = vpop.xlane.xlu0 %586
    %v588 = vsel %vm458, %v546, 0.0
    %589 = vadd.xlane.f32.xlu0 %v588
    %v590 = vpop.xlane.xlu0 %589
    %v591 = vsel %vm458, %v548, 0.0
    %592 = vadd.xlane.f32.xlu0 %v591
    %v593 = vpop.xlane.xlu0 %592
    %v594 = vsel %vm458, %v550, 0.0
    %595 = vadd.xlane.f32.xlu0 %v594
    %v596 = vpop.xlane.xlu0 %595
    %v597 = vsel %vm458, %v552, 0.0
    %598 = vadd.xlane.f32.xlu0 %v597
    %v599 = vpop.xlane.xlu0 %598
    %v600 = vsel %vm458, %v554, 0.0
    %601 = vadd.xlane.f32.xlu0 %v600
    %v602 = vpop.xlane.xlu0 %601
    %v603 = vsel %vm458, %v556, 0.0
    %604 = vadd.xlane.f32.xlu0 %v603
    %v605 = vpop.xlane.xlu0 %604
    %v606 = vsel %vm458, %v558, 0.0
    %607 = vadd.xlane.f32.xlu0 %v606
    %v608 = vpop.xlane.xlu0 %607
    %v609 = vsel %vm458, %v560, 0.0
    %610 = vadd.xlane.f32.xlu0 %v609
    %v611 = vpop.xlane.xlu0 %610
    %v612 = vsel %vm458, %v562, 0.0
    %613 = vadd.xlane.f32.xlu0 %v612
    %v614 = vpop.xlane.xlu0 %613
    %v615 = vsel %vm458, %v564, 0.0
    %616 = vadd.xlane.f32.xlu0 %v615
    %v617 = vpop.xlane.xlu0 %616
    %v618 = vsel %vm458, %v566, 0.0
    %619 = vadd.xlane.f32.xlu0 %v618
    %v620 = vpop.xlane.xlu0 %619
    %v621 = vsel %vm458, %v568, 0.0
    %622 = vadd.xlane.f32.xlu0 %v621
    %v623 = vpop.xlane.xlu0 %622
    %v624 = vsel %vm458, %v570, 0.0
    %625 = vadd.xlane.f32.xlu0 %v624
    %v626 = vpop.xlane.xlu0 %625
    %v627 = vsel %vm458, %v572, 0.0
    %628 = vadd.xlane.f32.xlu0 %v627
    %v629 = vpop.xlane.xlu0 %628
    %v630 = vsel %vm458, %v574, 0.0
    %631 = vadd.xlane.f32.xlu0 %v630
    %v632 = vpop.xlane.xlu0 %631
    %v633 = vsel %vm458, %v576, 0.0
    %634 = vadd.xlane.f32.xlu0 %v633
    %v635 = vpop.xlane.xlu0 %634
    %v636 = vsel %vm458, %v578, 0.0
    %637 = vadd.xlane.f32.xlu0 %v636
    %v638 = vpop.xlane.xlu0 %637
    %v639 = vrcp.pop %v581
    %v640 = vrcp.pop %v584
    %v641 = vrcp.pop %v587
    %v642 = vrcp.pop %v590
    %v643 = vrcp.pop %v593
    %v644 = vrcp.pop %v596
    %v645 = vrcp.pop %v599
    %v646 = vrcp.pop %v602
    %v647 = vrcp.pop %v605
    %v648 = vrcp.pop %v608
    %v649 = vrcp.pop %v611
    %v650 = vrcp.pop %v614
    %v651 = vrcp.pop %v617
    %v652 = vrcp.pop %v620
    %v653 = vrcp.pop %v623
    %v654 = vrcp.pop %v626
    %v655 = vrcp.pop %v629
    %v656 = vrcp.pop %v632
    %v657 = vrcp.pop %v635
    %v658 = vrcp.pop %v638
    %v659 = vmul.f32 %v540, %v639
    %v660 = vmul.f32 %v542, %v640
    %v661 = vmul.f32 %v544, %v641
    %v662 = vmul.f32 %v546, %v642
    %v663 = vmul.f32 %v548, %v643
    %v664 = vmul.f32 %v550, %v644
    %v665 = vmul.f32 %v552, %v645
    %v666 = vmul.f32 %v554, %v646
    %v667 = vmul.f32 %v556, %v647
    %v668 = vmul.f32 %v558, %v648
    %v669 = vmul.f32 %v560, %v649
    %v670 = vmul.f32 %v562, %v650
    %v671 = vmul.f32 %v564, %v651
    %v672 = vmul.f32 %v566, %v652
    %v673 = vmul.f32 %v568, %v653
    %v674 = vmul.f32 %v570, %v654
    %v675 = vmul.f32 %v572, %v655
    %v676 = vmul.f32 %v574, %v656
    %v677 = vmul.f32 %v576, %v657
    %v678 = vmul.f32 %v578, %v658
    %679 = vrot.lane.b32.xlu0 %v155, 48
    %v680 = vpop.permute.xlu0 %679
    %681 = vrot.lane.b32.xlu0 %v160, 48
    %v682 = vpop.permute.xlu0 %681
    %v686 = vsel %vm458, %v659, 0
    %v689 = vsel %vm458, %v660, 0
    %v692 = vsel %vm458, %v661, 0
    %v695 = vsel %vm458, %v662, 0
    %v698 = vsel %vm458, %v663, 0
    %v701 = vsel %vm458, %v664, 0
    %v704 = vsel %vm458, %v665, 0
    %v707 = vsel %vm458, %v666, 0
    %v710 = vsel %vm458, %v667, 0
    %v713 = vsel %vm458, %v668, 0
    %v716 = vsel %vm458, %v669, 0
    %v719 = vsel %vm458, %v670, 0
    %v722 = vsel %vm458, %v671, 0
    %v725 = vsel %vm458, %v672, 0
    %v728 = vsel %vm458, %v673, 0
    %v731 = vsel %vm458, %v674, 0
    %v734 = vsel %vm458, %v675, 0
    %v737 = vsel %vm458, %v676, 0
    %v740 = vsel %vm458, %v677, 0
    %v743 = vsel %vm458, %v678, 0
    %745 = vmatprep.subr.mxu0 0.0
    %746 = vmatpush1.msra.mxu0 %v680
    %747 = vmatprep.subr.mxu0 0.0
    %748 = vmatpush1.msra.mxu0 %v682
    %749 = vmatprep.subr.mxu0 0.0
    %750 = vmatpush1.msra.mxu0 0.0
    %751 = vmatprep.subr.mxu0 0.0
    %752 = vmatpush1.msra.mxu0 0.0
    %753 = vmatprep.subr.mxu0 0.0
    %754 = vmatpush1.msra.mxu0 0.0
    %755 = vmatprep.subr.mxu0 0.0
    %756 = vmatpush1.msra.mxu0 0.0
    %757 = vmatprep.subr.mxu0 0.0
    %758 = vmatpush1.msra.mxu0 0.0
    %759 = vmatprep.subr.mxu0 0.0
    %760 = vmatpush1.msra.mxu0 0.0
    %761 = vmatprep.subr.mxu0 0.0
    %762 = vmatpush1.msra.mxu0 0.0
    %763 = vmatprep.subr.mxu0 0.0
    %764 = vmatpush1.msra.mxu0 0.0
    %765 = vmatprep.subr.mxu0 0.0
    %766 = vmatpush1.msra.mxu0 0.0
    %767 = vmatprep.subr.mxu0 0.0
    %768 = vmatpush1.msra.mxu0 0.0
    %769 = vmatprep.subr.mxu0 0.0
    %770 = vmatpush1.msra.mxu0 0.0
    %771 = vmatprep.subr.mxu0 0.0
    %772 = vmatpush1.msra.mxu0 0.0
    %773 = vmatprep.subr.mxu0 0.0
    %774 = vmatpush1.msra.mxu0 0.0
    %775 = vmatprep.subr.mxu0 0.0
    %776 = vmatpush1.msra.mxu0 0.0
    %777 = vmatprep.subr.mxu0 0.0
    %778 = vmatpush1.msra.mxu0 0.0
    %779 = vmatprep.subr.mxu0 0.0
    %780 = vmatpush1.msra.mxu0 0.0
    %781 = vmatprep.subr.mxu0 0.0
    %782 = vmatpush1.msra.mxu0 0.0
    %783 = vmatprep.subr.mxu0 0.0
    %784 = vmatpush1.msra.mxu0 0.0
    %785 = vmatprep.subr.mxu0 0.0
    %786 = vmatpush1.msra.mxu0 0.0
    %787 = vmatprep.subr.mxu0 0.0
    %788 = vmatpush1.msra.mxu0 0.0
    %789 = vmatprep.subr.mxu0 0.0
    %790 = vmatpush1.msra.mxu0 0.0
    %791 = vmatprep.subr.mxu0 0.0
    %792 = vmatpush1.msra.mxu0 0.0
    %793 = vmatprep.subr.mxu0 0.0
    %794 = vmatpush1.msra.mxu0 0.0
    %795 = vmatprep.subr.mxu0 0.0
    %796 = vmatpush1.msra.mxu0 0.0
    %797 = vmatprep.subr.mxu0 0.0
    %798 = vmatpush1.msra.mxu0 0.0
    %799 = vmatprep.subr.mxu0 0.0
    %800 = vmatpush1.msra.mxu0 0.0
    %801 = vmatprep.subr.mxu0 0.0
    %802 = vmatpush1.msra.mxu0 0.0
    %803 = vmatprep.subr.mxu0 0.0
    %804 = vmatpush1.msra.mxu0 0.0
    %805 = vmatprep.subr.mxu0 0.0
    %806 = vmatpush1.msra.mxu0 0.0
    %807 = vmatprep.subr.mxu0 0.0
    %808 = vmatpush1.msra.mxu0 0.0
    %809 = vmatprep.mubr.f32.mxu0 0.0
    %810 = vmatmul.mubr.f32.gmra.mrb[0].mxu0 %v686
    %v811 = vpop.f32.mrb[0].mxu0
    %v812 = vadd.f32 0.0, %v811
    %v813 = vpop.f32.mrb[0].mxu0
    %814 = vmatprep.mubr.f32.mxu0 0.0
    %815 = vmatmul.mubr.f32.gmra.mrb[0].mxu0 %v689
    %v816 = vpop.f32.mrb[0].mxu0
    %v817 = vadd.f32 0.0, %v816
    %v818 = vpop.f32.mrb[0].mxu0
    %819 = vmatprep.mubr.f32.mxu0 0.0
    %820 = vmatmul.mubr.f32.gmra.mrb[0].mxu0 %v692
    %v821 = vpop.f32.mrb[0].mxu0
    %v822 = vadd.f32 0.0, %v821
    %v823 = vpop.f32.mrb[0].mxu0
    %824 = vmatprep.mubr.f32.mxu0 0.0
    %825 = vmatmul.mubr.f32.gmra.mrb[0].mxu0 %v695
    %v826 = vpop.f32.mrb[0].mxu0
    %v827 = vadd.f32 0.0, %v826
    %v828 = vpop.f32.mrb[0].mxu0
    %829 = vmatprep.mubr.f32.mxu0 0.0
    %830 = vmatmul.mubr.f32.gmra.mrb[0].mxu0 %v698
    %v831 = vpop.f32.mrb[0].mxu0
    %v832 = vadd.f32 0.0, %v831
    %v833 = vpop.f32.mrb[0].mxu0
    %834 = vmatprep.mubr.f32.mxu0 0.0
    %835 = vmatmul.mubr.f32.gmra.mrb[0].mxu0 %v701
    %v836 = vpop.f32.mrb[0].mxu0
    %v837 = vadd.f32 0.0, %v836
    %v838 = vpop.f32.mrb[0].mxu0
    %839 = vmatprep.mubr.f32.mxu0 0.0
    %840 = vmatmul.mubr.f32.gmra.mrb[0].mxu0 %v704
    %v841 = vpop.f32.mrb[0].mxu0
    %v842 = vadd.f32 0.0, %v841
    %v843 = vpop.f32.mrb[0].mxu0
    %844 = vmatprep.mubr.f32.mxu0 0.0
    %845 = vmatmul.mubr.f32.gmra.mrb[0].mxu0 %v707
    %v846 = vpop.f32.mrb[0].mxu0
    %v847 = vadd.f32 0.0, %v846
    %v848 = vpop.f32.mrb[0].mxu0
    %849 = vmatprep.mubr.f32.mxu0 0.0
    %850 = vmatmul.mubr.f32.gmra.mrb[0].mxu0 %v710
    %v851 = vpop.f32.mrb[0].mxu0
    %v852 = vadd.f32 0.0, %v851
    %v853 = vpop.f32.mrb[0].mxu0
    %854 = vmatprep.mubr.f32.mxu0 0.0
    %855 = vmatmul.mubr.f32.gmra.mrb[0].mxu0 %v713
    %v856 = vpop.f32.mrb[0].mxu0
    %v857 = vadd.f32 0.0, %v856
    %v858 = vpop.f32.mrb[0].mxu0
    %859 = vmatprep.mubr.f32.mxu0 0.0
    %860 = vmatmul.mubr.f32.gmra.mrb[0].mxu0 %v716
    %v861 = vpop.f32.mrb[0].mxu0
    %v862 = vadd.f32 0.0, %v861
    %v863 = vpop.f32.mrb[0].mxu0
    %864 = vmatprep.mubr.f32.mxu0 0.0
    %865 = vmatmul.mubr.f32.gmra.mrb[0].mxu0 %v719
    %v866 = vpop.f32.mrb[0].mxu0
    %v867 = vadd.f32 0.0, %v866
    %v868 = vpop.f32.mrb[0].mxu0
    %869 = vmatprep.mubr.f32.mxu0 0.0
    %870 = vmatmul.mubr.f32.gmra.mrb[0].mxu0 %v722
    %v871 = vpop.f32.mrb[0].mxu0
    %v872 = vadd.f32 0.0, %v871
    %v873 = vpop.f32.mrb[0].mxu0
    %874 = vmatprep.mubr.f32.mxu0 0.0
    %875 = vmatmul.mubr.f32.gmra.mrb[0].mxu0 %v725
    %v876 = vpop.f32.mrb[0].mxu0
    %v877 = vadd.f32 0.0, %v876
    %v878 = vpop.f32.mrb[0].mxu0
    %879 = vmatprep.mubr.f32.mxu0 0.0
    %880 = vmatmul.mubr.f32.gmra.mrb[0].mxu0 %v728
    %v881 = vpop.f32.mrb[0].mxu0
    %v882 = vadd.f32 0.0, %v881
    %v883 = vpop.f32.mrb[0].mxu0
    %884 = vmatprep.mubr.f32.mxu0 0.0
    %885 = vmatmul.mubr.f32.gmra.mrb[0].mxu0 %v731
    %v886 = vpop.f32.mrb[0].mxu0
    %v887 = vadd.f32 0.0, %v886
    %v888 = vpop.f32.mrb[0].mxu0
    %889 = vmatprep.mubr.f32.mxu0 0.0
    %890 = vmatmul.mubr.f32.gmra.mrb[0].mxu0 %v734
    %v891 = vpop.f32.mrb[0].mxu0
    %v892 = vadd.f32 0.0, %v891
    %v893 = vpop.f32.mrb[0].mxu0
    %894 = vmatprep.mubr.f32.mxu0 0.0
    %895 = vmatmul.mubr.f32.gmra.mrb[0].mxu0 %v737
    %v896 = vpop.f32.mrb[0].mxu0
    %v897 = vadd.f32 0.0, %v896
    %v898 = vpop.f32.mrb[0].mxu0
    %899 = vmatprep.mubr.f32.mxu0 0.0
    %900 = vmatmul.mubr.f32.gmra.mrb[0].mxu0 %v740
    %v901 = vpop.f32.mrb[0].mxu0
    %v902 = vadd.f32 0.0, %v901
    %v903 = vpop.f32.mrb[0].mxu0
    %904 = vmatprep.mubr.f32.mxu0 0.0
    %905 = vmatmul.mubr.f32.gmra.mrb[0].mxu0 %v743
    %v906 = vpop.f32.mrb[0].mxu0
    %v907 = vadd.f32 0.0, %v906
    %v908 = vpop.f32.mrb[0].mxu0
    %909 = vdwg.mxu0
    %v910 = vmul.f32 %v812, %v163
    %v911 = vmul.f32 %v817, %v164
    %v912 = vmul.f32 %v822, %v165
    %v913 = vmul.f32 %v827, %v166
    %v914 = vmul.f32 %v832, %v167
    %v915 = vmul.f32 %v837, %v168
    %v916 = vmul.f32 %v842, %v169
    %v917 = vmul.f32 %v847, %v170
    %v918 = vmul.f32 %v852, %v171
    %v919 = vmul.f32 %v857, %v172
    %v920 = vmul.f32 %v862, %v173
    %v921 = vmul.f32 %v867, %v174
    %v922 = vmul.f32 %v872, %v175
    %v923 = vmul.f32 %v877, %v176
    %v924 = vmul.f32 %v882, %v177
    %v925 = vmul.f32 %v887, %v178
    %v926 = vmul.f32 %v892, %v179
    %v927 = vmul.f32 %v897, %v180
    %v928 = vmul.f32 %v902, %v181
    %v929 = vmul.f32 %v907, %v182
    %v930 = vsel %vm81, %v910, 0.0
    %v931 = vsel %vm81, %v912, 0.0
    %v932 = vadd.f32 %v930, %v931
    %v933 = vsel %vm81, %v914, 0.0
    %v934 = vadd.f32 %v932, %v933
    %v935 = vsel %vm81, %v916, 0.0
    %v936 = vadd.f32 %v934, %v935
    %v937 = vsel %vm81, %v918, 0.0
    %v938 = vadd.f32 %v936, %v937
    %v939 = vsel %vm81, %v920, 0.0
    %v940 = vadd.f32 %v938, %v939
    %v941 = vsel %vm81, %v922, 0.0
    %v942 = vadd.f32 %v940, %v941
    %v943 = vsel %vm81, %v924, 0.0
    %v944 = vadd.f32 %v942, %v943
    %v945 = vsel %vm81, %v926, 0.0
    %v946 = vadd.f32 %v944, %v945
    %v947 = vsel %vm81, %v928, 0.0
    %v948 = vadd.f32 %v946, %v947
    %v949 = vsel %vm81, %v911, 0.0
    %v950 = vsel %vm81, %v913, 0.0
    %v951 = vadd.f32 %v949, %v950
    %v952 = vsel %vm81, %v915, 0.0
    %v953 = vadd.f32 %v951, %v952
    %v954 = vsel %vm81, %v917, 0.0
    %v955 = vadd.f32 %v953, %v954
    %v956 = vsel %vm81, %v919, 0.0
    %v957 = vadd.f32 %v955, %v956
    %v958 = vsel %vm81, %v921, 0.0
    %v959 = vadd.f32 %v957, %v958
    %v960 = vsel %vm81, %v923, 0.0
    %v961 = vadd.f32 %v959, %v960
    %v962 = vsel %vm81, %v925, 0.0
    %v963 = vadd.f32 %v961, %v962
    %v964 = vsel %vm81, %v927, 0.0
    %v965 = vadd.f32 %v963, %v964
    %v966 = vsel %vm81, %v929, 0.0
    %v967 = vadd.f32 %v965, %v966
    %v968 = vld [vmem:[#allocation2 + $0x28] sm:$0xff]
    %v969 = vld [vmem:[#allocation2 + $0x30] sm:$0xff]
    %v970 = vld [vmem:[#allocation2 + $0x38] sm:$0xff]
    %v971 = vld [vmem:[#allocation2 + $0x40] sm:$0xff]
    %v972 = vld [vmem:[#allocation2 + $0x48] sm:$0xff]
    %v973 = vld [vmem:[#allocation4 + $0x22] sm:$0x1]
    %v974 = vlaneseq
    %v975 = vshrl.u32 %v974, 7
    %v976 = vsub.s32 0, %v975
    %v977 = vrot.slane %v973, %v976
    %v979 = vsel %vm81, %v948, 0
    %v982 = vsel %vm81, %v967, 0
    %984 = vmatprep.subr.mxu0 0.0
    %985 = vmatpush1.msra.mxu0 %v968
    %986 = vmatprep.subr.mxu0 0.0
    %987 = vmatpush1.msra.mxu0 %v969
    %988 = vmatprep.subr.mxu0 0.0
    %989 = vmatpush1.msra.mxu0 %v970
    %990 = vmatprep.subr.mxu0 0.0
    %991 = vmatpush1.msra.mxu0 %v971
    %992 = vmatprep.subr.mxu0 0.0
    %993 = vmatpush1.msra.mxu0 %v972
    %994 = vmatprep.subr.mxu0 0.0
    %995 = vmatpush1.msra.mxu0 0.0
    %996 = vmatprep.subr.mxu0 0.0
    %997 = vmatpush1.msra.mxu0 0.0
    %998 = vmatprep.subr.mxu0 0.0
    %999 = vmatpush1.msra.mxu0 0.0
    %1000 = vmatprep.subr.mxu0 0.0
    %1001 = vmatpush1.msra.mxu0 0.0
    %1002 = vmatprep.subr.mxu0 0.0
    %1003 = vmatpush1.msra.mxu0 0.0
    %1004 = vmatprep.subr.mxu0 0.0
    %1005 = vmatpush1.msra.mxu0 0.0
    %1006 = vmatprep.subr.mxu0 0.0
    %1007 = vmatpush1.msra.mxu0 0.0
    %1008 = vmatprep.subr.mxu0 0.0
    %1009 = vmatpush1.msra.mxu0 0.0
    %1010 = vmatprep.subr.mxu0 0.0
    %1011 = vmatpush1.msra.mxu0 0.0
    %1012 = vmatprep.subr.mxu0 0.0
    %1013 = vmatpush1.msra.mxu0 0.0
    %1014 = vmatprep.subr.mxu0 0.0
    %1015 = vmatpush1.msra.mxu0 0.0
    %1016 = vmatprep.subr.mxu0 0.0
    %1017 = vmatpush1.msra.mxu0 0.0
    %1018 = vmatprep.subr.mxu0 0.0
    %1019 = vmatpush1.msra.mxu0 0.0
    %1020 = vmatprep.subr.mxu0 0.0
    %1021 = vmatpush1.msra.mxu0 0.0
    %1022 = vmatprep.subr.mxu0 0.0
    %1023 = vmatpush1.msra.mxu0 0.0
    %1024 = vmatprep.subr.mxu0 0.0
    %1025 = vmatpush1.msra.mxu0 0.0
    %1026 = vmatprep.subr.mxu0 0.0
    %1027 = vmatpush1.msra.mxu0 0.0
    %1028 = vmatprep.subr.mxu0 0.0
    %1029 = vmatpush1.msra.mxu0 0.0
    %1030 = vmatprep.subr.mxu0 0.0
    %1031 = vmatpush1.msra.mxu0 0.0
    %1032 = vmatprep.subr.mxu0 0.0
    %1033 = vmatpush1.msra.mxu0 0.0
    %1034 = vmatprep.subr.mxu0 0.0
    %1035 = vmatpush1.msra.mxu0 0.0
    %1036 = vmatprep.subr.mxu0 0.0
    %1037 = vmatpush1.msra.mxu0 0.0
    %1038 = vmatprep.subr.mxu0 0.0
    %1039 = vmatpush1.msra.mxu0 0.0
    %1040 = vmatprep.subr.mxu0 0.0
    %1041 = vmatpush1.msra.mxu0 0.0
    %1042 = vmatprep.subr.mxu0 0.0
    %1043 = vmatpush1.msra.mxu0 0.0
    %1044 = vmatprep.subr.mxu0 0.0
    %1045 = vmatpush1.msra.mxu0 0.0
    %1046 = vmatprep.subr.mxu0 0.0
    %1047 = vmatpush1.msra.mxu0 0.0
    %1048 = vmatprep.mubr.f32.mxu0 0.0
    %1049 = vmatmul.mubr.f32.gmra.mrb[0].mxu0 %v979
    %v1050 = vpop.f32.mrb[0].mxu0
    %v1051 = vadd.f32 %v977, %v1050
    %v1052 = vpop.f32.mrb[0].mxu0
    %1053 = vmatprep.mubr.f32.mxu0 0.0
    %1054 = vmatmul.mubr.f32.gmra.mrb[0].mxu0 %v982
    %v1055 = vpop.f32.mrb[0].mxu0
    %v1056 = vadd.f32 %v977, %v1055
    %v1057 = vpop.f32.mrb[0].mxu0
    %1058 = vdwg.mxu0
    %v1059 = vld [vmem:[#allocation4 + $0x23] sm:$0x1]
    %v1060 = vld [vmem:[#allocation4 + $0x24] sm:$0x1]
    %v1061 = vadd.f32 %v69, %v1051
    %v1062 = vadd.f32 %v70, %v1056
    %v1063 = vsel %vm81, %v1061, 0.0
    %1064 = vadd.xlane.f32.xlu0 %v1063
    %v1065 = vpop.xlane.xlu0 %1064
    %v1066 = vsel %vm81, %v1062, 0.0
    %1067 = vadd.xlane.f32.xlu0 %v1066
    %v1068 = vpop.xlane.xlu0 %1067
    %v1069 = vrcp.pop 40.0
    %v1070 = vmul.f32 %v1065, %v1069
    %v1071 = vmul.f32 %v1068, %v1069
    %v1072 = vsub.f32 %v1061, %v1070
    %v1073 = vsub.f32 %v1062, %v1071
    %v1074 = vmul.f32 %v1072, %v1072
    %v1075 = vmul.f32 %v1073, %v1073
    %v1076 = vsel %vm81, %v1074, 0.0
    %1077 = vadd.xlane.f32.xlu0 %v1076
    %v1078 = vpop.xlane.xlu0 %1077
    %v1079 = vsel %vm81, %v1075, 0.0
    %1080 = vadd.xlane.f32.xlu0 %v1079
    %v1081 = vpop.xlane.xlu0 %1080
    %v1082 = vmul.f32 %v1078, %v1069
    %v1083 = vmul.f32 %v1081, %v1069
    %v1084 = vadd.f32 %v1082, 1e-05
    %v1085 = vadd.f32 %v1083, 1e-05
    %v1086 = vrsqrt.pop %v1084
    %v1087 = vrsqrt.pop %v1085
    %v1088 = vmul.f32 %v1072, %v1086
    %v1089 = vmul.f32 %v1073, %v1087
    %v1090 = vlaneseq
    %v1091 = vshrl.u32 %v1090, 7
    %v1092 = vsub.s32 0, %v1091
    %v1093 = vrot.slane %v1059, %v1092
    %v1094 = vmul.f32 %v1088, %v1093
    %v1095 = vmul.f32 %v1089, %v1093
    %v1096 = vlaneseq
    %v1097 = vshrl.u32 %v1096, 7
    %v1098 = vsub.s32 0, %v1097
    %v1099 = vrot.slane %v1060, %v1098
    %v1100 = vadd.f32 %v1094, %v1099
    %v1101 = vadd.f32 %v1095, %v1099
    %v1102 = vld [vmem:[#allocation2 + $0x50] sm:$0xff]
    %v1103 = vld [vmem:[#allocation2 + $0x58] sm:$0xff]
    %v1104 = vld [vmem:[#allocation2 + $0x60] sm:$0xff]
    %v1105 = vld [vmem:[#allocation2 + $0x68] sm:$0xff]
    %v1106 = vld [vmem:[#allocation2 + $0x70] sm:$0xff]
    %v1107 = vld [vmem:[#allocation4 + $0x25] sm:$0x1]
    %v1108 = vld [vmem:[#allocation2 + $0x78] sm:$0xff]
    %v1109 = vld [vmem:[#allocation2 + $0x80] sm:$0xff]
    %v1110 = vld [vmem:[#allocation2 + $0x88] sm:$0xff]
    %v1111 = vld [vmem:[#allocation2 + $0x90] sm:$0xff]
    %v1112 = vld [vmem:[#allocation2 + $0x98] sm:$0xff]
    %v1113 = vld [vmem:[#allocation2 + $0xa0] sm:$0xff]
    %v1114 = vld [vmem:[#allocation2 + $0xa8] sm:$0xff]
    %v1115 = vld [vmem:[#allocation2 + $0xb0] sm:$0xff]
    %v1116 = vld [vmem:[#allocation4 + $0x26] sm:$0x1]
    %v1117 = vlaneseq
    %v1118 = vshrl.u32 %v1117, 7
    %v1119 = vsub.s32 0, %v1118
    %v1120 = vrot.slane %v1107, %v1119
    %v1122 = vsel %vm81, %v1100, 0
    %v1125 = vsel %vm81, %v1101, 0
    %1127 = vmatprep.subr.mxu0 0.0
    %1128 = vmatpush1.msra.mxu0 %v1102
    %1129 = vmatprep.subr.mxu0 0.0
    %1130 = vmatpush1.msra.mxu0 %v1103
    %1131 = vmatprep.subr.mxu0 0.0
    %1132 = vmatpush1.msra.mxu0 %v1104
    %1133 = vmatprep.subr.mxu0 0.0
    %1134 = vmatpush1.msra.mxu0 %v1105
    %1135 = vmatprep.subr.mxu0 0.0
    %1136 = vmatpush1.msra.mxu0 %v1106
    %1137 = vmatprep.subr.mxu0 0.0
    %1138 = vmatpush1.msra.mxu0 0.0
    %1139 = vmatprep.subr.mxu0 0.0
    %1140 = vmatpush1.msra.mxu0 0.0
    %1141 = vmatprep.subr.mxu0 0.0
    %1142 = vmatpush1.msra.mxu0 0.0
    %1143 = vmatprep.subr.mxu0 0.0
    %1144 = vmatpush1.msra.mxu0 0.0
    %1145 = vmatprep.subr.mxu0 0.0
    %1146 = vmatpush1.msra.mxu0 0.0
    %1147 = vmatprep.subr.mxu0 0.0
    %1148 = vmatpush1.msra.mxu0 0.0
    %1149 = vmatprep.subr.mxu0 0.0
    %1150 = vmatpush1.msra.mxu0 0.0
    %1151 = vmatprep.subr.mxu0 0.0
    %1152 = vmatpush1.msra.mxu0 0.0
    %1153 = vmatprep.subr.mxu0 0.0
    %1154 = vmatpush1.msra.mxu0 0.0
    %1155 = vmatprep.subr.mxu0 0.0
    %1156 = vmatpush1.msra.mxu0 0.0
    %1157 = vmatprep.subr.mxu0 0.0
    %1158 = vmatpush1.msra.mxu0 0.0
    %1159 = vmatprep.subr.mxu0 0.0
    %1160 = vmatpush1.msra.mxu0 0.0
    %1161 = vmatprep.subr.mxu0 0.0
    %1162 = vmatpush1.msra.mxu0 0.0
    %1163 = vmatprep.subr.mxu0 0.0
    %1164 = vmatpush1.msra.mxu0 0.0
    %1165 = vmatprep.subr.mxu0 0.0
    %1166 = vmatpush1.msra.mxu0 0.0
    %1167 = vmatprep.subr.mxu0 0.0
    %1168 = vmatpush1.msra.mxu0 0.0
    %1169 = vmatprep.subr.mxu0 0.0
    %1170 = vmatpush1.msra.mxu0 0.0
    %1171 = vmatprep.subr.mxu0 0.0
    %1172 = vmatpush1.msra.mxu0 0.0
    %1173 = vmatprep.subr.mxu0 0.0
    %1174 = vmatpush1.msra.mxu0 0.0
    %1175 = vmatprep.subr.mxu0 0.0
    %1176 = vmatpush1.msra.mxu0 0.0
    %1177 = vmatprep.subr.mxu0 0.0
    %1178 = vmatpush1.msra.mxu0 0.0
    %1179 = vmatprep.subr.mxu0 0.0
    %1180 = vmatpush1.msra.mxu0 0.0
    %1181 = vmatprep.subr.mxu0 0.0
    %1182 = vmatpush1.msra.mxu0 0.0
    %1183 = vmatprep.subr.mxu0 0.0
    %1184 = vmatpush1.msra.mxu0 0.0
    %1185 = vmatprep.subr.mxu0 0.0
    %1186 = vmatpush1.msra.mxu0 0.0
    %1187 = vmatprep.subr.mxu0 0.0
    %1188 = vmatpush1.msra.mxu0 0.0
    %1189 = vmatprep.subr.mxu0 0.0
    %1190 = vmatpush1.msra.mxu0 0.0
    %1191 = vmatprep.mubr.f32.mxu0 0.0
    %1192 = vmatmul.mubr.f32.gmra.mrb[0].mxu0 %v1122
    %v1193 = vpop.f32.mrb[0].mxu0
    %v1194 = vadd.f32 %v1120, %v1193
    %v1195 = vpop.f32.mrb[0].mxu0
    %1196 = vmatprep.mubr.f32.mxu0 0.0
    %1197 = vmatmul.mubr.f32.gmra.mrb[0].mxu0 %v1125
    %v1198 = vpop.f32.mrb[0].mxu0
    %v1199 = vadd.f32 %v1120, %v1198
    %v1200 = vpop.f32.mrb[0].mxu0
    %1201 = vdwg.mxu0
    %v1202 = vmax.f32 %v1194, 0.0
    %v1203 = vmax.f32 %v1199, 0.0
    %v1204 = vlaneseq
    %v1205 = vshrl.u32 %v1204, 7
    %v1206 = vsub.s32 0, %v1205
    %v1207 = vrot.slane %v1116, %v1206
    %vm1208 = vcmask 523264
    %v1210 = vsel %vm1208, %v1202, 0
    %v1213 = vsel %vm1208, %v1203, 0
    %1215 = vmatprep.subr.mxu0 0.0
    %1216 = vmatpush1.msra.mxu0 %v1108
    %1217 = vmatprep.subr.mxu0 0.0
    %1218 = vmatpush1.msra.mxu0 %v1109
    %1219 = vmatprep.subr.mxu0 0.0
    %1220 = vmatpush1.msra.mxu0 %v1110
    %1221 = vmatprep.subr.mxu0 0.0
    %1222 = vmatpush1.msra.mxu0 %v1111
    %1223 = vmatprep.subr.mxu0 0.0
    %1224 = vmatpush1.msra.mxu0 %v1112
    %1225 = vmatprep.subr.mxu0 0.0
    %1226 = vmatpush1.msra.mxu0 %v1113
    %1227 = vmatprep.subr.mxu0 0.0
    %1228 = vmatpush1.msra.mxu0 %v1114
    %1229 = vmatprep.subr.mxu0 0.0
    %1230 = vmatpush1.msra.mxu0 %v1115
    %1231 = vmatprep.subr.mxu0 0.0
    %1232 = vmatpush1.msra.mxu0 0.0
    %1233 = vmatprep.subr.mxu0 0.0
    %1234 = vmatpush1.msra.mxu0 0.0
    %1235 = vmatprep.subr.mxu0 0.0
    %1236 = vmatpush1.msra.mxu0 0.0
    %1237 = vmatprep.subr.mxu0 0.0
    %1238 = vmatpush1.msra.mxu0 0.0
    %1239 = vmatprep.subr.mxu0 0.0
    %1240 = vmatpush1.msra.mxu0 0.0
    %1241 = vmatprep.subr.mxu0 0.0
    %1242 = vmatpush1.msra.mxu0 0.0
    %1243 = vmatprep.subr.mxu0 0.0
    %1244 = vmatpush1.msra.mxu0 0.0
    %1245 = vmatprep.subr.mxu0 0.0
    %1246 = vmatpush1.msra.mxu0 0.0
    %1247 = vmatprep.subr.mxu0 0.0
    %1248 = vmatpush1.msra.mxu0 0.0
    %1249 = vmatprep.subr.mxu0 0.0
    %1250 = vmatpush1.msra.mxu0 0.0
    %1251 = vmatprep.subr.mxu0 0.0
    %1252 = vmatpush1.msra.mxu0 0.0
    %1253 = vmatprep.subr.mxu0 0.0
    %1254 = vmatpush1.msra.mxu0 0.0
    %1255 = vmatprep.subr.mxu0 0.0
    %1256 = vmatpush1.msra.mxu0 0.0
    %1257 = vmatprep.subr.mxu0 0.0
    %1258 = vmatpush1.msra.mxu0 0.0
    %1259 = vmatprep.subr.mxu0 0.0
    %1260 = vmatpush1.msra.mxu0 0.0
    %1261 = vmatprep.subr.mxu0 0.0
    %1262 = vmatpush1.msra.mxu0 0.0
    %1263 = vmatprep.subr.mxu0 0.0
    %1264 = vmatpush1.msra.mxu0 0.0
    %1265 = vmatprep.subr.mxu0 0.0
    %1266 = vmatpush1.msra.mxu0 0.0
    %1267 = vmatprep.subr.mxu0 0.0
    %1268 = vmatpush1.msra.mxu0 0.0
    %1269 = vmatprep.subr.mxu0 0.0
    %1270 = vmatpush1.msra.mxu0 0.0
    %1271 = vmatprep.subr.mxu0 0.0
    %1272 = vmatpush1.msra.mxu0 0.0
    %1273 = vmatprep.subr.mxu0 0.0
    %1274 = vmatpush1.msra.mxu0 0.0
    %1275 = vmatprep.subr.mxu0 0.0
    %1276 = vmatpush1.msra.mxu0 0.0
    %1277 = vmatprep.subr.mxu0 0.0
    %1278 = vmatpush1.msra.mxu0 0.0
    %1279 = vmatprep.mubr.f32.mxu0 0.0
    %1280 = vmatmul.mubr.f32.gmra.mrb[0].mxu0 %v1210
    %v1281 = vpop.f32.mrb[0].mxu0
    %v1282 = vadd.f32 %v1207, %v1281
    %v1283 = vpop.f32.mrb[0].mxu0
    %1284 = vmatprep.mubr.f32.mxu0 0.0
    %1285 = vmatmul.mubr.f32.gmra.mrb[0].mxu0 %v1213
    %v1286 = vpop.f32.mrb[0].mxu0
    %v1287 = vadd.f32 %v1207, %v1286
    %v1288 = vpop.f32.mrb[0].mxu0
    %1289 = vdwg.mxu0
    %v1290 = vld [vmem:[#allocation4 + $0x27] sm:$0x1]
    %v1291 = vld [vmem:[#allocation4 + $0x28] sm:$0x1]
    %v1292 = vadd.f32 %v1100, %v1282
    %v1293 = vadd.f32 %v1101, %v1287
    %v1294 = vsel %vm81, %v1292, 0.0
    %1295 = vadd.xlane.f32.xlu0 %v1294
    %v1296 = vpop.xlane.xlu0 %1295
    %v1297 = vsel %vm81, %v1293, 0.0
    %1298 = vadd.xlane.f32.xlu0 %v1297
    %v1299 = vpop.xlane.xlu0 %1298
    %v1300 = vmul.f32 %v1296, %v1069
    %v1301 = vmul.f32 %v1299, %v1069
    %v1302 = vsub.f32 %v1292, %v1300
    %v1303 = vsub.f32 %v1293, %v1301
    %v1304 = vmul.f32 %v1302, %v1302
    %v1305 = vmul.f32 %v1303, %v1303
    %v1306 = vsel %vm81, %v1304, 0.0
    %1307 = vadd.xlane.f32.xlu0 %v1306
    %v1308 = vpop.xlane.xlu0 %1307
    %v1309 = vsel %vm81, %v1305, 0.0
    %1310 = vadd.xlane.f32.xlu0 %v1309
    %v1311 = vpop.xlane.xlu0 %1310
    %v1312 = vmul.f32 %v1308, %v1069
    %v1313 = vmul.f32 %v1311, %v1069
    %v1314 = vadd.f32 %v1312, 1e-05
    %v1315 = vadd.f32 %v1313, 1e-05
    %v1316 = vrsqrt.pop %v1314
    %v1317 = vrsqrt.pop %v1315
    %v1318 = vmul.f32 %v1302, %v1316
    %v1319 = vmul.f32 %v1303, %v1317
    %v1320 = vlaneseq
    %v1321 = vshrl.u32 %v1320, 7
    %v1322 = vsub.s32 0, %v1321
    %v1323 = vrot.slane %v1290, %v1322
    %v1324 = vmul.f32 %v1318, %v1323
    %v1325 = vmul.f32 %v1319, %v1323
    %v1326 = vlaneseq
    %v1327 = vshrl.u32 %v1326, 7
    %v1328 = vsub.s32 0, %v1327
    %v1329 = vrot.slane %v1291, %v1328
    %v1330 = vadd.f32 %v1324, %v1329
    %v1331 = vadd.f32 %v1325, %v1329
    %v1332 = vld [vmem:[#allocation4 + $0x29] sm:$0x1]
    %v1333 = vld [vmem:[#allocation4 + $0x2a] sm:$0x1]
    %v1334 = vlaneseq
    %v1335 = vshrl.u32 %v1334, 7
    %v1336 = vsub.s32 0, %v1335
    %v1337 = vrot.slane %v1332, %v1336
    %v1338 = vmul.f32 %v1330, %v1337
    %v1339 = vmul.f32 %v1331, %v1337
    %v1340 = vsel %vm81, %v1338, 0.0
    %1341 = vadd.xlane.f32.xlu0 %v1340
    %v1342 = vpop.xlane.xlu0 %1341
    %v1343 = vsel %vm81, %v1339, 0.0
    %1344 = vadd.xlane.f32.xlu0 %v1343
    %v1345 = vpop.xlane.xlu0 %1344
    %v1346 = vlaneseq
    %v1347 = vshrl.u32 %v1346, 7
    %v1348 = vsub.s32 0, %v1347
    %v1349 = vrot.slane %v1333, %v1348
    %v1350 = vadd.f32 %v1342, %v1349
    %v1351 = vadd.f32 %v1345, %v1349
    %vm1352 = vcmp.ge.f32.partialorder %v1350, 0.0
    %vm1353 = vcmp.ge.f32.partialorder %v1351, 0.0
    %v1354 = vmul.f32 %v1350, 0.01
    %v1355 = vmul.f32 %v1351, 0.01
    %v1356 = vsel %vm1352, %v1350, %v1354
    %v1357 = vsel %vm1353, %v1351, %v1355
    %vm1358 = vcmask 7168
    %1359 = vst.msk [vmem:[%s3] sm:$0xff] %vm1358, %v1356
    %1360 = vst.msk [vmem:[%s3 + $0x8] sm:$0xff] %vm1358, %v1357
    // Predicated region
    $region22: #{tpu_custom_call.1} parent=1 // pred_check
      _
    $region23: #{tpu_custom_call.1} parent=1 // pred_check_branch
      %1362 = sbr.rel (0) target = $region25
    $region24: #{tpu_custom_call.1} parent=1 // pred_region
      _
    $region25: #{tpu_custom_call.1} parent=1 // pred_fallthru
      _
    // Predicated region
    $region26: #{tpu_custom_call.1} parent=1 // pred_check
      _
    $region27: #{tpu_custom_call.1} parent=1 // pred_check_branch
      %1364 = sbr.rel (0) target = $region29
    $region28: #{tpu_custom_call.1} parent=1 // pred_region
      _
    $region29: #{tpu_custom_call.1} parent=1 // pred_fallthru
      _
    %1365 = vsyncpa [#allocation3], 1
    %1366 = vsyncpa [#allocation5], 1

</llo_original>
